<compile_context>
chip_gen: v5e
topology: v5e:2x2
jax: 0.10.0
libtpu: 0.0.40
codegen_flags: <defaults>
</compile_context>

<pallas_src>
import jax
import jax.numpy as jnp
from jax.experimental import pallas as pl
from jax.experimental.pallas import tpu as pltpu

# ---------------- model configuration (matches the PyTorch module) ----------
IN_DIM = 28 * 28          # encoder_layer_sizes = [784, 256]
HID = 256
LATENT = 32               # latent_size
HEAD = 2 * LATENT         # fused means | log_var head width
STATS = 128               # lane-dense packed stats output (means|log_var|z|z)
OUT_DIM = 28 * 28         # decoder_layer_sizes = [256, 784]
TB_MAX = 512              # max batch tile (rows per grid step)


# ---------------- fused Pallas kernel ---------------------------------------
def vae_kernel(x_ref, eps_ref,
               w1_ref, b1_ref,          # encoder L0  (784 -> 256) + ReLU
               wmv_ref, bmv_ref,        # fused means|log_var (256 -> 64)
               wd1_ref, bd1_ref,        # decoder L0  (32  -> 256) + ReLU
               wd2_ref, bd2_ref,        # decoder L1  (256 -> 784) + Sigmoid
               recon_ref, stats_ref):
    # --- Encoder: Linear + ReLU (bf16 weights, f32 MXU accumulate) ----------
    x = x_ref[...].astype(jnp.bfloat16)
    h = jnp.dot(x, w1_ref[...], preferred_element_type=jnp.float32) + b1_ref[...]
    h = jnp.maximum(h, 0.0)

    # fused means|log_var head: one (TB,256)@(256,64) matmul
    ml = jnp.dot(h.astype(jnp.bfloat16), wmv_ref[...],
                 preferred_element_type=jnp.float32) + bmv_ref[...]
    means = ml[:, :LATENT]
    log_var = ml[:, LATENT:]

    # --- Reparameterization: z = eps * exp(0.5*log_var) + means (f32, EUP) --
    z = eps_ref[...] * jnp.exp(0.5 * log_var) + means

    # --- Decoder: Linear + ReLU, Linear + Sigmoid ---------------------------
    d = jnp.dot(z.astype(jnp.bfloat16), wd1_ref[...],
                preferred_element_type=jnp.float32) + bd1_ref[...]
    d = jnp.maximum(d, 0.0)
    logits = jnp.dot(d.astype(jnp.bfloat16), wd2_ref[...],
                     preferred_element_type=jnp.float32) + bd2_ref[...]
    # numerically-stable sigmoid on the EUP (tanh), no VALU divide;
    # cast at the store (recon output is bf16 by default).
    recon_ref[...] = (0.5 * (jnp.tanh(0.5 * logits) + 1.0)).astype(recon_ref.dtype)

    # lane-dense packed stats: [means | log_var | z | z-dup] -> (TB, 128) f32
    stats_ref[...] = jnp.concatenate([ml, z, z], axis=-1)


# ---------------- wrapper ----------------------------------------------------
def _round_up(v, m):
    return ((v + m - 1) // m) * m


def _choose_tb(batch):
    # Largest tile up to TB_MAX (amortizes ~0.35us/step overhead, streams the
    # 256-wide MXU well) while keeping >= 2 grid steps whenever possible so the
    # 'parallel' batch axis actually splits across v7x's two TensorCores.
    return min(TB_MAX, max(8, _round_up(pl.cdiv(batch, 2), 8)))


def vae_forward(x, eps, params, recon_dtype=jnp.bfloat16):
    """x: (B,1,28,28) or (B,784) f32/bf16; eps: (B, LATENT) f32.
    Returns (recon_x, means, log_var, z)."""
    if x.ndim > 2:
        x = x.reshape(-1, IN_DIM)          # mirrors x.view(-1, 28*28)
    B = x.shape[0]
    tb = _choose_tb(B)
    nb = pl.cdiv(B, tb)
    B_pad = nb * tb
    if B_pad != B:
        # only pad the batch axis when B is not a tile multiple (last-dim stays 784)
        x = jnp.pad(x, ((0, B_pad - B), (0, 0)))
        eps = jnp.pad(eps, ((0, B_pad - B), (0, 0)))

    w1, b1, wmv, bmv, wd1, bd1, wd2, bd2 = params

    def full(arr):
        # weights/biases stay VMEM-resident across grid steps (constant block index)
        return pl.BlockSpec(arr.shape, lambda i: (0, 0))

    recon, stats = pl.pallas_call(
        vae_kernel,
        out_shape=(
            jax.ShapeDtypeStruct((B_pad, OUT_DIM), recon_dtype),   # recon (784 wide)
            jax.ShapeDtypeStruct((B_pad, STATS), jnp.float32),     # packed stats
        ),
        grid_spec=pltpu.PrefetchScalarGridSpec(
            num_scalar_prefetch=0,
            grid=(nb,),
            in_specs=[
                pl.BlockSpec((tb, IN_DIM), lambda i: (i, 0)),      # x tile (unpadded 784)
                pl.BlockSpec((tb, LATENT), lambda i: (i, 0)),      # eps tile
                full(w1), full(b1), full(wmv), full(bmv),
                full(wd1), full(bd1), full(wd2), full(bd2),
            ],
            out_specs=(
                pl.BlockSpec((tb, OUT_DIM), lambda i: (i, 0)),
                pl.BlockSpec((tb, STATS), lambda i: (i, 0)),
            ),
        ),
        compiler_params=pltpu.CompilerParams(
            dimension_semantics=("parallel",)),                    # megacore split on v7x
    )(x, eps, w1, b1, wmv, bmv, wd1, bd1, wd2, bd2)

    if B_pad != B:
        recon = recon[:B]
        stats = stats[:B]
    means = stats[:, 0:LATENT]
    log_var = stats[:, LATENT:2 * LATENT]
    z = stats[:, 2 * LATENT:3 * LATENT]
    return recon, means, log_var, z


# ---------------- deterministic parameter init (PyTorch-Linear-style) --------
def init_linear(key, in_dim, out_dim):
    kw, kb = jax.random.split(key)
    bound = 1.0 / jnp.sqrt(jnp.float32(in_dim))
    w = jax.random.uniform(kw, (in_dim, out_dim), jnp.float32, -bound, bound)
    b = jax.random.uniform(kb, (1, out_dim), jnp.float32, -bound, bound)
    return w, b


def init_params(key):
    k1, k2, k3, k4, k5 = jax.random.split(key, 5)
    w1, b1 = init_linear(k1, IN_DIM, HID)         # encoder L0
    wm, bm = init_linear(k2, HID, LATENT)         # linear_means
    wv, bv = init_linear(k3, HID, LATENT)         # linear_log_var
    wd1, bd1 = init_linear(k4, LATENT, HID)       # decoder L0
    wd2, bd2 = init_linear(k5, HID, OUT_DIM)      # decoder L1 (sigmoid head)

    wmv = jnp.concatenate([wm, wv], axis=1)       # fused head (256, 64)
    bmv = jnp.concatenate([bm, bv], axis=1)       # (1, 64)
    # bf16 weights (MXU consumes bf16; halves weight HBM traffic); f32 biases.
    return (w1.astype(jnp.bfloat16), b1,
            wmv.astype(jnp.bfloat16), bmv,
            wd1.astype(jnp.bfloat16), bd1,
            wd2.astype(jnp.bfloat16), bd2)


# ---------------- pure-JAX reference (same bf16-weight / f32-acc math) -------
# Note: this validates the kernel against the SAME reduced-precision recipe
# (bf16 weights, tanh-sigmoid); expect ~1e-3-level drift vs. an f32 PyTorch run.
def vae_ref(x, eps, params):
    if x.ndim > 2:
        x = x.reshape(-1, IN_DIM)
    w1, b1, wmv, bmv, wd1, bd1, wd2, bd2 = params
    h = jax.nn.relu(jnp.dot(x.astype(jnp.bfloat16), w1,
                            preferred_element_type=jnp.float32) + b1)
    ml = jnp.dot(h.astype(jnp.bfloat16), wmv, preferred_element_type=jnp.float32) + bmv
    means, log_var = ml[:, :LATENT], ml[:, LATENT:]
    z = eps * jnp.exp(0.5 * log_var) + means
    d = jax.nn.relu(jnp.dot(z.astype(jnp.bfloat16), wd1,
                            preferred_element_type=jnp.float32) + bd1)
    logits = jnp.dot(d.astype(jnp.bfloat16), wd2,
                     preferred_element_type=jnp.float32) + bd2
    recon = 0.5 * (jnp.tanh(0.5 * logits) + 1.0)
    return recon, means, log_var, z


if __name__ == "__main__":
    key = jax.random.PRNGKey(0)
    k_x, k_eps, k_p = jax.random.split(key, 3)

    BATCH = 64   # small; -> TB=32, 2 grid steps (exercises pipeline + 2-TC split)

    # synthetic "image" batch in NCHW, values in [0, 1]
    x = jax.random.uniform(k_x, (BATCH, 1, 28, 28), jnp.float32)
    # eps drawn host-side (mirrors torch.randn in forward); passed in so the
    # kernel is deterministic.
    eps = jax.random.normal(k_eps, (BATCH, LATENT), jnp.float32)
    params = init_params(k_p)

    fwd = jax.jit(vae_forward)
    recon_x, means, log_var, z = jax.block_until_ready(fwd(x, eps, params))

    # correctness check vs pure-JAX reference (same bf16-weight / f32-acc math)
    r_recon, r_means, r_logvar, r_z = vae_ref(x, eps, params)
    assert recon_x.shape == (BATCH, OUT_DIM) and recon_x.dtype == jnp.bfloat16
    assert means.shape == (BATCH, LATENT)
    assert log_var.shape == (BATCH, LATENT)
    assert z.shape == (BATCH, LATENT)

    # recon is stored in bf16 -> compare in f32 with bf16-level tolerance
    d_recon = jnp.max(jnp.abs(recon_x.astype(jnp.float32) - r_recon))
    assert jnp.allclose(recon_x.astype(jnp.float32), r_recon,
                        atol=1e-2, rtol=1e-2), float(d_recon)
    for a, b in ((means, r_means), (log_var, r_logvar), (z, r_z)):
        assert jnp.allclose(a, b, atol=2e-3, rtol=2e-3), float(jnp.max(jnp.abs(a - b)))

    print("KERNEL_OK")
</pallas_src>

<mosaic_0001>
module attributes {stable_mosaic.version = 11 : i64} {
  func.func @vae_kernel(%arg0: i32, %arg1: memref<32x784xf32, #tpu.memory_space<vmem>>, %arg2: memref<32x32xf32, #tpu.memory_space<vmem>>, %arg3: memref<784x256xbf16, #tpu.memory_space<vmem>>, %arg4: memref<1x256xf32, #tpu.memory_space<vmem>>, %arg5: memref<256x64xbf16, #tpu.memory_space<vmem>>, %arg6: memref<1x64xf32, #tpu.memory_space<vmem>>, %arg7: memref<32x256xbf16, #tpu.memory_space<vmem>>, %arg8: memref<1x256xf32, #tpu.memory_space<vmem>>, %arg9: memref<256x784xbf16, #tpu.memory_space<vmem>>, %arg10: memref<1x784xf32, #tpu.memory_space<vmem>>, %arg11: memref<32x784xbf16, #tpu.memory_space<vmem>>, %arg12: memref<32x128xf32, #tpu.memory_space<vmem>>) attributes {dimension_semantics = [#tpu.dimension_semantics<parallel>], iteration_bounds = array<i64: 2>, scalar_prefetch = 0 : i64, scratch_operands = 0 : i64, tpu.core_type = #tpu.core_type<tc>, window_params = [{transform_indices = @transform_0, window_bounds = array<i64: 32, 784>}, {transform_indices = @transform_1, window_bounds = array<i64: 32, 32>}, {pipeline_mode = #tpu.pipeline_mode<synchronous>, transform_indices = @transform_2, window_bounds = array<i64: 784, 256>}, {pipeline_mode = #tpu.pipeline_mode<synchronous>, transform_indices = @transform_3, window_bounds = array<i64: 1, 256>}, {pipeline_mode = #tpu.pipeline_mode<synchronous>, transform_indices = @transform_4, window_bounds = array<i64: 256, 64>}, {pipeline_mode = #tpu.pipeline_mode<synchronous>, transform_indices = @transform_5, window_bounds = array<i64: 1, 64>}, {pipeline_mode = #tpu.pipeline_mode<synchronous>, transform_indices = @transform_6, window_bounds = array<i64: 32, 256>}, {pipeline_mode = #tpu.pipeline_mode<synchronous>, transform_indices = @transform_7, window_bounds = array<i64: 1, 256>}, {pipeline_mode = #tpu.pipeline_mode<synchronous>, transform_indices = @transform_8, window_bounds = array<i64: 256, 784>}, {pipeline_mode = #tpu.pipeline_mode<synchronous>, transform_indices = @transform_9, window_bounds = array<i64: 1, 784>}, {transform_indices = @transform_10, window_bounds = array<i64: 32, 784>}, {transform_indices = @transform_11, window_bounds = array<i64: 32, 128>}]} {
    %c0 = arith.constant 0 : index
    %c0_0 = arith.constant 0 : index
    %0 = vector.load %arg1[%c0, %c0_0] : memref<32x784xf32, #tpu.memory_space<vmem>>, vector<32x784xf32>
    %1 = arith.truncf %0 : vector<32x784xf32> to vector<32x784xbf16>
    %c0_1 = arith.constant 0 : index
    %c0_2 = arith.constant 0 : index
    %2 = vector.load %arg3[%c0_1, %c0_2] : memref<784x256xbf16, #tpu.memory_space<vmem>>, vector<784x256xbf16>
    %cst = arith.constant dense<0.000000e+00> : vector<32x256xf32>
    %3 = tpu.matmul %1, %2, %cst {dimension_numbers = #tpu.dot_dimension_numbers<[1], [0], [0], [1], [0, 0, 1, 1], [], []>} : vector<32x784xbf16>, vector<784x256xbf16>, vector<32x256xf32> -> vector<32x256xf32>
    %c0_3 = arith.constant 0 : index
    %c0_4 = arith.constant 0 : index
    %4 = vector.load %arg4[%c0_3, %c0_4] : memref<1x256xf32, #tpu.memory_space<vmem>>, vector<1x256xf32>
    %5 = vector.broadcast %4 : vector<1x256xf32> to vector<32x256xf32>
    %6 = arith.addf %3, %5 : vector<32x256xf32>
    %cst_5 = arith.constant 0.000000e+00 : f32
    %7 = vector.broadcast %cst_5 : f32 to vector<32x256xf32>
    %8 = arith.maximumf %6, %7 : vector<32x256xf32>
    %9 = arith.truncf %8 : vector<32x256xf32> to vector<32x256xbf16>
    %c0_6 = arith.constant 0 : index
    %c0_7 = arith.constant 0 : index
    %10 = vector.load %arg5[%c0_6, %c0_7] : memref<256x64xbf16, #tpu.memory_space<vmem>>, vector<256x64xbf16>
    %cst_8 = arith.constant dense<0.000000e+00> : vector<32x64xf32>
    %11 = tpu.matmul %9, %10, %cst_8 {dimension_numbers = #tpu.dot_dimension_numbers<[1], [0], [0], [1], [0, 0, 1, 1], [], []>} : vector<32x256xbf16>, vector<256x64xbf16>, vector<32x64xf32> -> vector<32x64xf32>
    %c0_9 = arith.constant 0 : index
    %c0_10 = arith.constant 0 : index
    %12 = vector.load %arg6[%c0_9, %c0_10] : memref<1x64xf32, #tpu.memory_space<vmem>>, vector<1x64xf32>
    %13 = vector.broadcast %12 : vector<1x64xf32> to vector<32x64xf32>
    %14 = arith.addf %11, %13 : vector<32x64xf32>
    %15 = vector.extract_strided_slice %14 {offsets = [0, 0], sizes = [32, 32], strides = [1, 1]} : vector<32x64xf32> to vector<32x32xf32>
    %16 = vector.extract_strided_slice %14 {offsets = [0, 32], sizes = [32, 32], strides = [1, 1]} : vector<32x64xf32> to vector<32x32xf32>
    %c0_11 = arith.constant 0 : index
    %c0_12 = arith.constant 0 : index
    %17 = vector.load %arg2[%c0_11, %c0_12] : memref<32x32xf32, #tpu.memory_space<vmem>>, vector<32x32xf32>
    %cst_13 = arith.constant 5.000000e-01 : f32
    %18 = vector.broadcast %cst_13 : f32 to vector<32x32xf32>
    %19 = arith.mulf %18, %16 : vector<32x32xf32>
    %20 = math.exp %19 : vector<32x32xf32>
    %21 = arith.mulf %17, %20 : vector<32x32xf32>
    %22 = arith.addf %21, %15 : vector<32x32xf32>
    %23 = arith.truncf %22 : vector<32x32xf32> to vector<32x32xbf16>
    %c0_14 = arith.constant 0 : index
    %c0_15 = arith.constant 0 : index
    %24 = vector.load %arg7[%c0_14, %c0_15] : memref<32x256xbf16, #tpu.memory_space<vmem>>, vector<32x256xbf16>
    %cst_16 = arith.constant dense<0.000000e+00> : vector<32x256xf32>
    %25 = tpu.matmul %23, %24, %cst_16 {dimension_numbers = #tpu.dot_dimension_numbers<[1], [0], [0], [1], [0, 0, 1, 1], [], []>} : vector<32x32xbf16>, vector<32x256xbf16>, vector<32x256xf32> -> vector<32x256xf32>
    %c0_17 = arith.constant 0 : index
    %c0_18 = arith.constant 0 : index
    %26 = vector.load %arg8[%c0_17, %c0_18] : memref<1x256xf32, #tpu.memory_space<vmem>>, vector<1x256xf32>
    %27 = vector.broadcast %26 : vector<1x256xf32> to vector<32x256xf32>
    %28 = arith.addf %25, %27 : vector<32x256xf32>
    %cst_19 = arith.constant 0.000000e+00 : f32
    %29 = vector.broadcast %cst_19 : f32 to vector<32x256xf32>
    %30 = arith.maximumf %28, %29 : vector<32x256xf32>
    %31 = arith.truncf %30 : vector<32x256xf32> to vector<32x256xbf16>
    %c0_20 = arith.constant 0 : index
    %c0_21 = arith.constant 0 : index
    %32 = vector.load %arg9[%c0_20, %c0_21] : memref<256x784xbf16, #tpu.memory_space<vmem>>, vector<256x784xbf16>
    %cst_22 = arith.constant dense<0.000000e+00> : vector<32x784xf32>
    %33 = tpu.matmul %31, %32, %cst_22 {dimension_numbers = #tpu.dot_dimension_numbers<[1], [0], [0], [1], [0, 0, 1, 1], [], []>} : vector<32x256xbf16>, vector<256x784xbf16>, vector<32x784xf32> -> vector<32x784xf32>
    %c0_23 = arith.constant 0 : index
    %c0_24 = arith.constant 0 : index
    %34 = vector.load %arg10[%c0_23, %c0_24] : memref<1x784xf32, #tpu.memory_space<vmem>>, vector<1x784xf32>
    %35 = vector.broadcast %34 : vector<1x784xf32> to vector<32x784xf32>
    %36 = arith.addf %33, %35 : vector<32x784xf32>
    %cst_25 = arith.constant 5.000000e-01 : f32
    %37 = vector.broadcast %cst_25 : f32 to vector<32x784xf32>
    %38 = arith.mulf %37, %36 : vector<32x784xf32>
    %39 = math.tanh %38 : vector<32x784xf32>
    %cst_26 = arith.constant 1.000000e+00 : f32
    %40 = vector.broadcast %cst_26 : f32 to vector<32x784xf32>
    %41 = arith.addf %39, %40 : vector<32x784xf32>
    %cst_27 = arith.constant 5.000000e-01 : f32
    %42 = vector.broadcast %cst_27 : f32 to vector<32x784xf32>
    %43 = arith.mulf %42, %41 : vector<32x784xf32>
    %44 = arith.truncf %43 : vector<32x784xf32> to vector<32x784xbf16>
    %c0_28 = arith.constant 0 : index
    %c0_29 = arith.constant 0 : index
    %45 = vector.load %arg11[%c0_28, %c0_29] : memref<32x784xbf16, #tpu.memory_space<vmem>>, vector<32x784xbf16>
    tpu.vector_store %arg11[%c0_28, %c0_29], %44 {strides = array<i32>} : memref<32x784xbf16, #tpu.memory_space<vmem>>, vector<32x784xbf16>,
    %46 = tpu.concatenate %14, %22, %22 in 1 : vector<32x64xf32>, vector<32x32xf32>, vector<32x32xf32> -> vector<32x128xf32>
    %c0_30 = arith.constant 0 : index
    %c0_31 = arith.constant 0 : index
    %47 = vector.load %arg12[%c0_30, %c0_31] : memref<32x128xf32, #tpu.memory_space<vmem>>, vector<32x128xf32>
    tpu.vector_store %arg12[%c0_30, %c0_31], %46 {strides = array<i32>} : memref<32x128xf32, #tpu.memory_space<vmem>>, vector<32x128xf32>,
    return
  }
  func.func @transform_0(%arg0: i32) -> (i32, i32) {
    %c0_i32 = arith.constant 0 : i32
    %c0_i32_0 = arith.constant 0 : i32
    return %arg0, %c0_i32 : i32, i32
  }
  func.func @transform_1(%arg0: i32) -> (i32, i32) {
    %c0_i32 = arith.constant 0 : i32
    %c0_i32_0 = arith.constant 0 : i32
    return %arg0, %c0_i32 : i32, i32
  }
  func.func @transform_2(%arg0: i32) -> (i32, i32) {
    %c0_i32 = arith.constant 0 : i32
    %c0_i32_0 = arith.constant 0 : i32
    %c0_i32_1 = arith.constant 0 : i32
    return %c0_i32, %c0_i32_0 : i32, i32
  }
  func.func @transform_3(%arg0: i32) -> (i32, i32) {
    %c0_i32 = arith.constant 0 : i32
    %c0_i32_0 = arith.constant 0 : i32
    %c0_i32_1 = arith.constant 0 : i32
    return %c0_i32, %c0_i32_0 : i32, i32
  }
  func.func @transform_4(%arg0: i32) -> (i32, i32) {
    %c0_i32 = arith.constant 0 : i32
    %c0_i32_0 = arith.constant 0 : i32
    %c0_i32_1 = arith.constant 0 : i32
    return %c0_i32, %c0_i32_0 : i32, i32
  }
  func.func @transform_5(%arg0: i32) -> (i32, i32) {
    %c0_i32 = arith.constant 0 : i32
    %c0_i32_0 = arith.constant 0 : i32
    %c0_i32_1 = arith.constant 0 : i32
    return %c0_i32, %c0_i32_0 : i32, i32
  }
  func.func @transform_6(%arg0: i32) -> (i32, i32) {
    %c0_i32 = arith.constant 0 : i32
    %c0_i32_0 = arith.constant 0 : i32
    %c0_i32_1 = arith.constant 0 : i32
    return %c0_i32, %c0_i32_0 : i32, i32
  }
  func.func @transform_7(%arg0: i32) -> (i32, i32) {
    %c0_i32 = arith.constant 0 : i32
    %c0_i32_0 = arith.constant 0 : i32
    %c0_i32_1 = arith.constant 0 : i32
    return %c0_i32, %c0_i32_0 : i32, i32
  }
  func.func @transform_8(%arg0: i32) -> (i32, i32) {
    %c0_i32 = arith.constant 0 : i32
    %c0_i32_0 = arith.constant 0 : i32
    %c0_i32_1 = arith.constant 0 : i32
    return %c0_i32, %c0_i32_0 : i32, i32
  }
  func.func @transform_9(%arg0: i32) -> (i32, i32) {
    %c0_i32 = arith.constant 0 : i32
    %c0_i32_0 = arith.constant 0 : i32
    %c0_i32_1 = arith.constant 0 : i32
    return %c0_i32, %c0_i32_0 : i32, i32
  }
  func.func @transform_10(%arg0: i32) -> (i32, i32) {
    %c0_i32 = arith.constant 0 : i32
    %c0_i32_0 = arith.constant 0 : i32
    return %arg0, %c0_i32 : i32, i32
  }
  func.func @transform_11(%arg0: i32) -> (i32, i32) {
    %c0_i32 = arith.constant 0 : i32
    %c0_i32_0 = arith.constant 0 : i32
    return %arg0, %c0_i32 : i32, i32
  }
}

</mosaic_0001>

<llo_original>
// kernel: vae_forward.1
$region0: #{vae_forward.1}
  #allocation0 [shape = 'u32[]', space=smem, size = 0x4, offset = 0x4, fixed_abs, tag = 'smem constant byte address 0x4 - core index']
  #allocation1 [shape = 'u32[72,128]{1,0:T(1,128)}', space=vmem, size = 0x9000, scoped, tag = 'internal scratch']
  %s0 = inlined_call_operand.vmem [shape: f32[64,784], index: 0, kind: input, shape index: {}]
  %s1 = inlined_call_operand.vmem [shape: f32[64,32], index: 1, kind: input, shape index: {}]
  %s2 = inlined_call_operand.vmem [shape: bf16[784,256], index: 2, kind: input, shape index: {}]
  %s3 = inlined_call_operand.vmem [shape: f32[1,256], index: 3, kind: input, shape index: {}]
  %s4 = inlined_call_operand.vmem [shape: bf16[256,64], index: 4, kind: input, shape index: {}]
  %s5 = inlined_call_operand.vmem [shape: f32[1,64], index: 5, kind: input, shape index: {}]
  %s6 = inlined_call_operand.vmem [shape: bf16[32,256], index: 6, kind: input, shape index: {}]
  %s7 = inlined_call_operand.vmem [shape: f32[1,256], index: 7, kind: input, shape index: {}]
  %s8 = inlined_call_operand.vmem [shape: bf16[256,784], index: 8, kind: input, shape index: {}]
  %s9 = inlined_call_operand.vmem [shape: f32[1,784], index: 9, kind: input, shape index: {}]
  %s10 = inlined_call_operand.hbm [shape: bf16[64,784], index: 10, kind: output, shape index: {0}]
  %s11 = inlined_call_operand.vmem [shape: f32[64,128], index: 11, kind: output, shape index: {1}]
  %12 = xla_tuple %s10, %s11
  %s13 = sld [smem:[#allocation0]]
  $region81: #{vae_forward.1} parent=0
    _
  %s15 = ssub.s32 1, %s13
  %s16 = scalar_select 0, %s15, %s13
  $region1: #{vae_forward.1} parent=0
    #allocation2 [shape = 'u8[114688]{0}', space=vmem, size = 0x1c000, scoped, tag = 'output window, operand 0']
    #allocation3 [shape = 's32[2]{0}', space=sflag, size = 0x8, scoped, tag = 'scoped memory for vae_forward.1']
    %17 = vsyncpa [#allocation3], 0
    %s18 = scalar_lea.sflag [#allocation3], 1
    %19 = vsyncpa %s18, 0
    loop: start=0, step=1, limit=4
    $region2: #{vae_forward.1} parent=1 // loop_pre_header
      _
    $region3: #{vae_forward.1} parent=1 // loop_header
      %s21 = sphi 0, %s25
      %p22 = scmp.ge.s32.totalorder %s21, 4
      %s31 = sphi 0, %s33
      %s34 = sphi 0, %s31
      %s35 = sphi 0, %s34
      %s51 = sphi 0, %s35
      %s57 = sphi 0, %s59
      %s60 = sphi 0, %s57
      %s61 = sphi 0, %s60
      %s77 = sphi 0, %s61
      %s81 = sphi 0, %s81
      %s83 = sphi 0, %s81
      %s84 = sphi 0, %s83
      %s98 = sphi 0, %s84
      %s102 = sphi 0, %s102
      %s104 = sphi 0, %s102
      %s105 = sphi 0, %s104
      %s119 = sphi 0, %s105
      %s123 = sphi 0, %s123
      %s125 = sphi 0, %s123
      %s126 = sphi 0, %s125
      %s140 = sphi 0, %s126
      %s144 = sphi 0, %s144
      %s146 = sphi 0, %s144
      %s147 = sphi 0, %s146
      %s161 = sphi 0, %s147
      %s165 = sphi 0, %s165
      %s167 = sphi 0, %s165
      %s168 = sphi 0, %s167
      %s182 = sphi 0, %s168
      %s186 = sphi 0, %s186
      %s188 = sphi 0, %s186
      %s189 = sphi 0, %s188
      %s203 = sphi 0, %s189
      %s207 = sphi 0, %s207
      %s209 = sphi 0, %s207
      %s210 = sphi 0, %s209
      %s224 = sphi 0, %s210
      %s228 = sphi 0, %s228
      %s230 = sphi 0, %s228
      %s231 = sphi 0, %s230
      %s245 = sphi 0, %s231
      %s251 = sphi 0, %s253
      %s254 = sphi 0, %s251
      %s255 = sphi 0, %s254
      %s271 = sphi 0, %s255
      %s277 = sphi 0, %s279
      %s280 = sphi 0, %s277
      %s281 = sphi 0, %s280
      %s297 = sphi 0, %s281
    $region4: #{vae_forward.1} parent=1 // loop_header_branch
      %24 = sbr.rel (%p22) target = $region8
    $region5: #{vae_forward.1} parent=1 // loop_body
      %s26 = ssub.s32 %s21, 1
      %s27 = ssub.s32 %s21, 2
      %s28 = sadd.s32 %s21, 1
      %s29 = ssub.s32 %s21, %s28
      %p30 = scmp.eq.s32.totalorder %s29, 0
      %s32 = sadd.s32 %s31, 1
      %s33 = scalar_select %p30, %s31, %s32
      %p36 = pneg %p30
      %p37 = scmp.eq.s32.totalorder %s21, 1
      %p38 = por %p36, %p37
      %p39 = scmp.ne.s32.totalorder %s31, %s34
      %p40 = scmp.eq.s32.totalorder %s21, 0
      %p41 = por %p39, %p40
      %p42 = scmp.ne.s32.totalorder %s31, %s34
      %p43 = scmp.eq.s32.totalorder %s26, 1
      %p44 = por %p42, %p43
      %p45 = scmp.ne.s32.totalorder %s34, %s35
      %p46 = scmp.eq.s32.totalorder %s26, 0
      %p47 = por %p45, %p46
      %p48 = scmp.ne.s32.totalorder %s34, %s35
      %p49 = scmp.eq.s32.totalorder %s27, 1
      %p50 = por %p48, %p49
      %p52 = scmp.ne.s32.totalorder %s35, %s51
      %p53 = scmp.eq.s32.totalorder %s27, 0
      %p54 = por %p52, %p53
      %s55 = ssub.s32 %s21, %s28
      %p56 = scmp.eq.s32.totalorder %s55, 0
      %s58 = sadd.s32 %s57, 1
      %s59 = scalar_select %p56, %s57, %s58
      %p62 = pneg %p56
      %p63 = scmp.eq.s32.totalorder %s21, 1
      %p64 = por %p62, %p63
      %p65 = scmp.ne.s32.totalorder %s57, %s60
      %p66 = scmp.eq.s32.totalorder %s21, 0
      %p67 = por %p65, %p66
      %p68 = scmp.ne.s32.totalorder %s57, %s60
      %p69 = scmp.eq.s32.totalorder %s26, 1
      %p70 = por %p68, %p69
      %p71 = scmp.ne.s32.totalorder %s60, %s61
      %p72 = scmp.eq.s32.totalorder %s26, 0
      %p73 = por %p71, %p72
      %p74 = scmp.ne.s32.totalorder %s60, %s61
      %p75 = scmp.eq.s32.totalorder %s27, 1
      %p76 = por %p74, %p75
      %p78 = scmp.ne.s32.totalorder %s61, %s77
      %p79 = scmp.eq.s32.totalorder %s27, 0
      %p80 = por %p78, %p79
      %s82 = sadd.s32 %s81, 1
      %p85 = scmp.eq.s32.totalorder %s21, 1
      %p86 = scmp.ne.s32.totalorder %s81, %s83
      %p87 = scmp.eq.s32.totalorder %s21, 0
      %p88 = por %p86, %p87
      %p89 = scmp.ne.s32.totalorder %s81, %s83
      %p90 = scmp.eq.s32.totalorder %s26, 1
      %p91 = por %p89, %p90
      %p92 = scmp.ne.s32.totalorder %s83, %s84
      %p93 = scmp.eq.s32.totalorder %s26, 0
      %p94 = por %p92, %p93
      %p95 = scmp.ne.s32.totalorder %s83, %s84
      %p96 = scmp.eq.s32.totalorder %s27, 1
      %p97 = por %p95, %p96
      %p99 = scmp.ne.s32.totalorder %s84, %s98
      %p100 = scmp.eq.s32.totalorder %s27, 0
      %p101 = por %p99, %p100
      %s103 = sadd.s32 %s102, 1
      %p106 = scmp.eq.s32.totalorder %s21, 1
      %p107 = scmp.ne.s32.totalorder %s102, %s104
      %p108 = scmp.eq.s32.totalorder %s21, 0
      %p109 = por %p107, %p108
      %p110 = scmp.ne.s32.totalorder %s102, %s104
      %p111 = scmp.eq.s32.totalorder %s26, 1
      %p112 = por %p110, %p111
      %p113 = scmp.ne.s32.totalorder %s104, %s105
      %p114 = scmp.eq.s32.totalorder %s26, 0
      %p115 = por %p113, %p114
      %p116 = scmp.ne.s32.totalorder %s104, %s105
      %p117 = scmp.eq.s32.totalorder %s27, 1
      %p118 = por %p116, %p117
      %p120 = scmp.ne.s32.totalorder %s105, %s119
      %p121 = scmp.eq.s32.totalorder %s27, 0
      %p122 = por %p120, %p121
      %s124 = sadd.s32 %s123, 1
      %p127 = scmp.eq.s32.totalorder %s21, 1
      %p128 = scmp.ne.s32.totalorder %s123, %s125
      %p129 = scmp.eq.s32.totalorder %s21, 0
      %p130 = por %p128, %p129
      %p131 = scmp.ne.s32.totalorder %s123, %s125
      %p132 = scmp.eq.s32.totalorder %s26, 1
      %p133 = por %p131, %p132
      %p134 = scmp.ne.s32.totalorder %s125, %s126
      %p135 = scmp.eq.s32.totalorder %s26, 0
      %p136 = por %p134, %p135
      %p137 = scmp.ne.s32.totalorder %s125, %s126
      %p138 = scmp.eq.s32.totalorder %s27, 1
      %p139 = por %p137, %p138
      %p141 = scmp.ne.s32.totalorder %s126, %s140
      %p142 = scmp.eq.s32.totalorder %s27, 0
      %p143 = por %p141, %p142
      %s145 = sadd.s32 %s144, 1
      %p148 = scmp.eq.s32.totalorder %s21, 1
      %p149 = scmp.ne.s32.totalorder %s144, %s146
      %p150 = scmp.eq.s32.totalorder %s21, 0
      %p151 = por %p149, %p150
      %p152 = scmp.ne.s32.totalorder %s144, %s146
      %p153 = scmp.eq.s32.totalorder %s26, 1
      %p154 = por %p152, %p153
      %p155 = scmp.ne.s32.totalorder %s146, %s147
      %p156 = scmp.eq.s32.totalorder %s26, 0
      %p157 = por %p155, %p156
      %p158 = scmp.ne.s32.totalorder %s146, %s147
      %p159 = scmp.eq.s32.totalorder %s27, 1
      %p160 = por %p158, %p159
      %p162 = scmp.ne.s32.totalorder %s147, %s161
      %p163 = scmp.eq.s32.totalorder %s27, 0
      %p164 = por %p162, %p163
      %s166 = sadd.s32 %s165, 1
      %p169 = scmp.eq.s32.totalorder %s21, 1
      %p170 = scmp.ne.s32.totalorder %s165, %s167
      %p171 = scmp.eq.s32.totalorder %s21, 0
      %p172 = por %p170, %p171
      %p173 = scmp.ne.s32.totalorder %s165, %s167
      %p174 = scmp.eq.s32.totalorder %s26, 1
      %p175 = por %p173, %p174
      %p176 = scmp.ne.s32.totalorder %s167, %s168
      %p177 = scmp.eq.s32.totalorder %s26, 0
      %p178 = por %p176, %p177
      %p179 = scmp.ne.s32.totalorder %s167, %s168
      %p180 = scmp.eq.s32.totalorder %s27, 1
      %p181 = por %p179, %p180
      %p183 = scmp.ne.s32.totalorder %s168, %s182
      %p184 = scmp.eq.s32.totalorder %s27, 0
      %p185 = por %p183, %p184
      %s187 = sadd.s32 %s186, 1
      %p190 = scmp.eq.s32.totalorder %s21, 1
      %p191 = scmp.ne.s32.totalorder %s186, %s188
      %p192 = scmp.eq.s32.totalorder %s21, 0
      %p193 = por %p191, %p192
      %p194 = scmp.ne.s32.totalorder %s186, %s188
      %p195 = scmp.eq.s32.totalorder %s26, 1
      %p196 = por %p194, %p195
      %p197 = scmp.ne.s32.totalorder %s188, %s189
      %p198 = scmp.eq.s32.totalorder %s26, 0
      %p199 = por %p197, %p198
      %p200 = scmp.ne.s32.totalorder %s188, %s189
      %p201 = scmp.eq.s32.totalorder %s27, 1
      %p202 = por %p200, %p201
      %p204 = scmp.ne.s32.totalorder %s189, %s203
      %p205 = scmp.eq.s32.totalorder %s27, 0
      %p206 = por %p204, %p205
      %s208 = sadd.s32 %s207, 1
      %p211 = scmp.eq.s32.totalorder %s21, 1
      %p212 = scmp.ne.s32.totalorder %s207, %s209
      %p213 = scmp.eq.s32.totalorder %s21, 0
      %p214 = por %p212, %p213
      %p215 = scmp.ne.s32.totalorder %s207, %s209
      %p216 = scmp.eq.s32.totalorder %s26, 1
      %p217 = por %p215, %p216
      %p218 = scmp.ne.s32.totalorder %s209, %s210
      %p219 = scmp.eq.s32.totalorder %s26, 0
      %p220 = por %p218, %p219
      %p221 = scmp.ne.s32.totalorder %s209, %s210
      %p222 = scmp.eq.s32.totalorder %s27, 1
      %p223 = por %p221, %p222
      %p225 = scmp.ne.s32.totalorder %s210, %s224
      %p226 = scmp.eq.s32.totalorder %s27, 0
      %p227 = por %p225, %p226
      %s229 = sadd.s32 %s228, 1
      %p232 = scmp.eq.s32.totalorder %s21, 1
      %p233 = scmp.ne.s32.totalorder %s228, %s230
      %p234 = scmp.eq.s32.totalorder %s21, 0
      %p235 = por %p233, %p234
      %p236 = scmp.ne.s32.totalorder %s228, %s230
      %p237 = scmp.eq.s32.totalorder %s26, 1
      %p238 = por %p236, %p237
      %p239 = scmp.ne.s32.totalorder %s230, %s231
      %p240 = scmp.eq.s32.totalorder %s26, 0
      %p241 = por %p239, %p240
      %p242 = scmp.ne.s32.totalorder %s230, %s231
      %p243 = scmp.eq.s32.totalorder %s27, 1
      %p244 = por %p242, %p243
      %p246 = scmp.ne.s32.totalorder %s231, %s245
      %p247 = scmp.eq.s32.totalorder %s27, 0
      %p248 = por %p246, %p247
      %s249 = ssub.s32 %s21, %s28
      %p250 = scmp.eq.s32.totalorder %s249, 0
      %s252 = sadd.s32 %s251, 1
      %s253 = scalar_select %p250, %s251, %s252
      %p256 = pneg %p250
      %p257 = scmp.eq.s32.totalorder %s21, 1
      %p258 = por %p256, %p257
      %p259 = scmp.ne.s32.totalorder %s251, %s254
      %p260 = scmp.eq.s32.totalorder %s21, 0
      %p261 = por %p259, %p260
      %p262 = scmp.ne.s32.totalorder %s251, %s254
      %p263 = scmp.eq.s32.totalorder %s26, 1
      %p264 = por %p262, %p263
      %p265 = scmp.ne.s32.totalorder %s254, %s255
      %p266 = scmp.eq.s32.totalorder %s26, 0
      %p267 = por %p265, %p266
      %p268 = scmp.ne.s32.totalorder %s254, %s255
      %p269 = scmp.eq.s32.totalorder %s27, 1
      %p270 = por %p268, %p269
      %p272 = scmp.ne.s32.totalorder %s255, %s271
      %p273 = scmp.eq.s32.totalorder %s27, 0
      %p274 = por %p272, %p273
      %s275 = ssub.s32 %s21, %s28
      %p276 = scmp.eq.s32.totalorder %s275, 0
      %s278 = sadd.s32 %s277, 1
      %s279 = scalar_select %p276, %s277, %s278
      %p282 = pneg %p276
      %p283 = scmp.eq.s32.totalorder %s21, 1
      %p284 = por %p282, %p283
      %p285 = scmp.ne.s32.totalorder %s277, %s280
      %p286 = scmp.eq.s32.totalorder %s21, 0
      %p287 = por %p285, %p286
      %p288 = scmp.ne.s32.totalorder %s277, %s280
      %p289 = scmp.eq.s32.totalorder %s26, 1
      %p290 = por %p288, %p289
      %p291 = scmp.ne.s32.totalorder %s280, %s281
      %p292 = scmp.eq.s32.totalorder %s26, 0
      %p293 = por %p291, %p292
      %p294 = scmp.ne.s32.totalorder %s280, %s281
      %p295 = scmp.eq.s32.totalorder %s27, 1
      %p296 = por %p294, %p295
      %p298 = scmp.ne.s32.totalorder %s281, %s297
      %p299 = scmp.eq.s32.totalorder %s27, 0
      %p300 = por %p298, %p299
      %p301 = scmp.le.s32.totalorder 1, %s21
      %p302 = scmp.lt.s32.totalorder %s21, 3
      %p303 = pnand %p301, %p302
      %p304 = pneg %p303
      // Predicated region
      $region9: #{vae_forward.1} parent=5 // pred_check
        _
      $region10: #{vae_forward.1} parent=5 // pred_check_branch
        %306 = sbr.rel (%p303) target = $region12
      $region11: #{vae_forward.1} parent=5 // pred_region
        %s307 = ssub.s32 %s21, 1
        // Predicated region
        $region13: #{vae_forward.1} parent=11 // pred_check
          %p308 = pneg %p94
        $region14: #{vae_forward.1} parent=11 // pred_check_branch
          %310 = sbr.rel (%p308) target = $region16
        $region15: #{vae_forward.1} parent=11 // pred_region
          _
        $region16: #{vae_forward.1} parent=11 // pred_fallthru
          _
        // Predicated region
        $region17: #{vae_forward.1} parent=11 // pred_check
          %p311 = pneg %p115
        $region18: #{vae_forward.1} parent=11 // pred_check_branch
          %313 = sbr.rel (%p311) target = $region20
        $region19: #{vae_forward.1} parent=11 // pred_region
          _
        $region20: #{vae_forward.1} parent=11 // pred_fallthru
          _
        // Predicated region
        $region21: #{vae_forward.1} parent=11 // pred_check
          %p314 = pneg %p136
        $region22: #{vae_forward.1} parent=11 // pred_check_branch
          %316 = sbr.rel (%p314) target = $region24
        $region23: #{vae_forward.1} parent=11 // pred_region
          _
        $region24: #{vae_forward.1} parent=11 // pred_fallthru
          _
        // Predicated region
        $region25: #{vae_forward.1} parent=11 // pred_check
          %p317 = pneg %p157
        $region26: #{vae_forward.1} parent=11 // pred_check_branch
          %319 = sbr.rel (%p317) target = $region28
        $region27: #{vae_forward.1} parent=11 // pred_region
          _
        $region28: #{vae_forward.1} parent=11 // pred_fallthru
          _
        // Predicated region
        $region29: #{vae_forward.1} parent=11 // pred_check
          %p320 = pneg %p178
        $region30: #{vae_forward.1} parent=11 // pred_check_branch
          %322 = sbr.rel (%p320) target = $region32
        $region31: #{vae_forward.1} parent=11 // pred_region
          _
        $region32: #{vae_forward.1} parent=11 // pred_fallthru
          _
        // Predicated region
        $region33: #{vae_forward.1} parent=11 // pred_check
          %p323 = pneg %p199
        $region34: #{vae_forward.1} parent=11 // pred_check_branch
          %325 = sbr.rel (%p323) target = $region36
        $region35: #{vae_forward.1} parent=11 // pred_region
          _
        $region36: #{vae_forward.1} parent=11 // pred_fallthru
          _
        // Predicated region
        $region37: #{vae_forward.1} parent=11 // pred_check
          %p326 = pneg %p220
        $region38: #{vae_forward.1} parent=11 // pred_check_branch
          %328 = sbr.rel (%p326) target = $region40
        $region39: #{vae_forward.1} parent=11 // pred_region
          _
        $region40: #{vae_forward.1} parent=11 // pred_fallthru
          _
        // Predicated region
        $region41: #{vae_forward.1} parent=11 // pred_check
          %p329 = pneg %p241
        $region42: #{vae_forward.1} parent=11 // pred_check_branch
          %331 = sbr.rel (%p329) target = $region44
        $region43: #{vae_forward.1} parent=11 // pred_region
          _
        $region44: #{vae_forward.1} parent=11 // pred_fallthru
          _
      $region12: #{vae_forward.1} parent=5 // pred_fallthru
        _
      %p332 = scmp.lt.s32.totalorder %s21, 2
      // Predicated region
      $region45: #{vae_forward.1} parent=5 // pred_check
        %p333 = pneg %p332
      $region46: #{vae_forward.1} parent=5 // pred_check_branch
        %335 = sbr.rel (%p333) target = $region48
      $region47: #{vae_forward.1} parent=5 // pred_region
        // Predicated region
        $region49: #{vae_forward.1} parent=47 // pred_check
          %p336 = pneg %p41
        $region50: #{vae_forward.1} parent=47 // pred_check_branch
          %338 = sbr.rel (%p336) target = $region52
        $region51: #{vae_forward.1} parent=47 // pred_region
          %s339 = smul.u32 4, %s21
          %p340 = scmp.lt.s32.totalorder %s339, 7
          %s341 = scalar_select %p340, %s339, 7
          %s342 = smul.addr %s341, 7
          %s343 = smul.addr %s342, 8
          %s344 = scalar_lea.vmem %s0, %s343
          %s345 = smul.u32 4, %s21
        $region52: #{vae_forward.1} parent=47 // pred_fallthru
          _
        // Predicated region
        $region53: #{vae_forward.1} parent=47 // pred_check
          %p346 = pneg %p67
        $region54: #{vae_forward.1} parent=47 // pred_check_branch
          %348 = sbr.rel (%p346) target = $region56
        $region55: #{vae_forward.1} parent=47 // pred_region
          %s349 = smul.u32 4, %s21
          %p350 = scmp.lt.s32.totalorder %s349, 7
          %s351 = scalar_select %p350, %s349, 7
          %s352 = smul.addr %s351, 8
          %s353 = scalar_lea.vmem %s1, %s352
          %s354 = smul.u32 4, %s21
        $region56: #{vae_forward.1} parent=47 // pred_fallthru
          _
      $region48: #{vae_forward.1} parent=5 // pred_fallthru
        _
      %p355 = scmp.le.s32.totalorder 1, %s21
      %p356 = scmp.lt.s32.totalorder %s21, 3
      %p357 = pnand %p355, %p356
      %p358 = pneg %p357
      // Predicated region
      $region57: #{vae_forward.1} parent=5 // pred_check
        _
      $region58: #{vae_forward.1} parent=5 // pred_check_branch
        %360 = sbr.rel (%p357) target = $region60
      $region59: #{vae_forward.1} parent=5 // pred_region
        %s361 = ssub.s32 %s21, 1
        %s362 = smul.u32 4, %s26
        %p363 = scmp.lt.s32.totalorder %s362, 7
        %s364 = scalar_select %p363, %s362, 7
        %s365 = smul.addr %s364, 7
        %s366 = smul.addr %s365, 8
        %s367 = scalar_lea.vmem %s0, %s366
        %p368 = pneg %p47
        %p369 = pneg %p44
        %s370 = smul.u32 4, %s26
        %p371 = scmp.lt.s32.totalorder %s370, 7
        %s372 = scalar_select %p371, %s370, 7
        %s373 = smul.addr %s372, 8
        %s374 = scalar_lea.vmem %s1, %s373
        %p375 = pneg %p73
        %p376 = pneg %p70
        %p377 = pneg %p94
        %p378 = pneg %p91
        %p379 = pneg %p115
        %p380 = pneg %p112
        %p381 = pneg %p136
        %p382 = pneg %p133
        %p383 = pneg %p157
        %p384 = pneg %p154
        %p385 = pneg %p178
        %p386 = pneg %p175
        %p387 = pneg %p199
        %p388 = pneg %p196
        %p389 = pneg %p220
        %p390 = pneg %p217
        %p391 = pneg %p241
        %p392 = pneg %p238
        %p393 = pneg %p267
        %p394 = pneg %p264
        %s395 = sand.u32 %s254, 1
        %s396 = scalar_lea.sflag [#allocation3], %s395
        %s397 = sand.u32 %s254, 1
        %s398 = smul.addr %s397, 112
        %s399 = scalar_lea.vmem [#allocation2], %s398
        %p400 = pneg %p293
        %p401 = pneg %p290
        %s402 = smul.u32 4, %s26
        %p403 = scmp.lt.s32.totalorder %s402, 7
        %s404 = scalar_select %p403, %s402, 7
        %s405 = smul.addr %s404, 8
        %s406 = scalar_lea.vmem %s11, %s405
        %s407 = smul.u32 4, %s26
        %p408 = scmp.lt.s32.totalorder %s407, 7
        %s409 = scalar_select %p408, %s407, 7
        %s410 = smul.addr %s409, 7
        %s411 = smul.addr %s410, 8
        %s412 = scalar_lea.vmem %s0, %s411
        %s413 = smul.u32 4, %s26
        %s414 = smul.u32 4, %s26
        %p415 = scmp.lt.s32.totalorder %s414, 7
        %s416 = scalar_select %p415, %s414, 7
        %s417 = smul.addr %s416, 8
        %s418 = scalar_lea.vmem %s1, %s417
        %s419 = smul.u32 4, %s26
        %s420 = smul.u32 4, %s26
        %s421 = smul.u32 4, %s26
        %p422 = scmp.lt.s32.totalorder %s421, 7
        %s423 = scalar_select %p422, %s421, 7
        %s424 = smul.addr %s423, 8
        %s425 = scalar_lea.vmem %s11, %s424
        %s426 = smul.u32 4, %s26
        %v428 = vld [vmem:[%s412] sm:$0xff]
        %v429 = vld [vmem:[%s412 + $0x8] sm:$0xff]
        %v430 = vld [vmem:[%s412 + $0x10] sm:$0xff]
        %v431 = vld [vmem:[%s412 + $0x18] sm:$0xff]
        %v432 = vld [vmem:[%s412 + $0x20] sm:$0xff]
        %v433 = vld [vmem:[%s412 + $0x28] sm:$0xff]
        %v434 = vld [vmem:[%s412 + $0x30] sm:$0xff]
        %v435 = vld [vmem:[%s412 + $0x38] sm:$0xff]
        %v436 = vld [vmem:[%s412 + $0x40] sm:$0xff]
        %v437 = vld [vmem:[%s412 + $0x48] sm:$0xff]
        %v438 = vld [vmem:[%s412 + $0x50] sm:$0xff]
        %v439 = vld [vmem:[%s412 + $0x58] sm:$0xff]
        %v440 = vld [vmem:[%s412 + $0x60] sm:$0xff]
        %v441 = vld [vmem:[%s412 + $0x68] sm:$0xff]
        %v442 = vld [vmem:[%s412 + $0x70] sm:$0xff]
        %v443 = vld [vmem:[%s412 + $0x78] sm:$0xff]
        %v444 = vld [vmem:[%s412 + $0x80] sm:$0xff]
        %v445 = vld [vmem:[%s412 + $0x88] sm:$0xff]
        %v446 = vld [vmem:[%s412 + $0x90] sm:$0xff]
        %v447 = vld [vmem:[%s412 + $0x98] sm:$0xff]
        %v448 = vld [vmem:[%s412 + $0xa0] sm:$0xff]
        %v449 = vld [vmem:[%s412 + $0xa8] sm:$0xff]
        %v450 = vld [vmem:[%s412 + $0xb0] sm:$0xff]
        %v451 = vld [vmem:[%s412 + $0xb8] sm:$0xff]
        %v452 = vld [vmem:[%s412 + $0xc0] sm:$0xff]
        %v453 = vld [vmem:[%s412 + $0xc8] sm:$0xff]
        %v454 = vld [vmem:[%s412 + $0xd0] sm:$0xff]
        %v455 = vld [vmem:[%s412 + $0xd8] sm:$0xff]
        %v456 = vpack.c.bf16 %v435, %v428
        %v457 = vpack.c.bf16 %v436, %v429
        %v458 = vpack.c.bf16 %v437, %v430
        %v459 = vpack.c.bf16 %v438, %v431
        %v460 = vpack.c.bf16 %v439, %v432
        %v461 = vpack.c.bf16 %v440, %v433
        %v462 = vpack.c.bf16 %v441, %v434
        %v463 = vpack.c.bf16 %v449, %v442
        %v464 = vpack.c.bf16 %v450, %v443
        %v465 = vpack.c.bf16 %v451, %v444
        %v466 = vpack.c.bf16 %v452, %v445
        %v467 = vpack.c.bf16 %v453, %v446
        %v468 = vpack.c.bf16 %v454, %v447
        %v469 = vpack.c.bf16 %v455, %v448
        %v470 = vld [vmem:[%s2] sm:$0xff]
        %v471 = vld [vmem:[%s2 + $0x8] sm:$0xff]
        %v472 = vld [vmem:[%s2 + $0x10] sm:$0xff]
        %v473 = vld [vmem:[%s2 + $0x18] sm:$0xff]
        %v474 = vld [vmem:[%s2 + $0x20] sm:$0xff]
        %v475 = vld [vmem:[%s2 + $0x28] sm:$0xff]
        %v476 = vld [vmem:[%s2 + $0x30] sm:$0xff]
        %v477 = vld [vmem:[%s2 + $0x38] sm:$0xff]
        %v478 = vld [vmem:[%s2 + $0x40] sm:$0xff]
        %v479 = vld [vmem:[%s2 + $0x48] sm:$0xff]
        %v480 = vld [vmem:[%s2 + $0x50] sm:$0xff]
        %v481 = vld [vmem:[%s2 + $0x58] sm:$0xff]
        %v482 = vld [vmem:[%s2 + $0x60] sm:$0xff]
        %v483 = vld [vmem:[%s2 + $0x68] sm:$0xff]
        %v484 = vld [vmem:[%s2 + $0x70] sm:$0xff]
        %v485 = vld [vmem:[%s2 + $0x78] sm:$0xff]
        %v486 = vld [vmem:[%s2 + $0x80] sm:$0xff]
        %v487 = vld [vmem:[%s2 + $0x88] sm:$0xff]
        %v488 = vld [vmem:[%s2 + $0x90] sm:$0xff]
        %v489 = vld [vmem:[%s2 + $0x98] sm:$0xff]
        %v490 = vld [vmem:[%s2 + $0xa0] sm:$0xff]
        %v491 = vld [vmem:[%s2 + $0xa8] sm:$0xff]
        %v492 = vld [vmem:[%s2 + $0xb0] sm:$0xff]
        %v493 = vld [vmem:[%s2 + $0xb8] sm:$0xff]
        %v494 = vld [vmem:[%s2 + $0xc0] sm:$0xff]
        %v495 = vld [vmem:[%s2 + $0xc8] sm:$0xff]
        %v496 = vld [vmem:[%s2 + $0xd0] sm:$0xff]
        %v497 = vld [vmem:[%s2 + $0xd8] sm:$0xff]
        %v498 = vld [vmem:[%s2 + $0xe0] sm:$0xff]
        %v499 = vld [vmem:[%s2 + $0xe8] sm:$0xff]
        %v500 = vld [vmem:[%s2 + $0xf0] sm:$0xff]
        %v501 = vld [vmem:[%s2 + $0xf8] sm:$0xff]
        %v502 = vld [vmem:[%s2 + $0x100] sm:$0xff]
        %v503 = vld [vmem:[%s2 + $0x108] sm:$0xff]
        %v504 = vld [vmem:[%s2 + $0x110] sm:$0xff]
        %v505 = vld [vmem:[%s2 + $0x118] sm:$0xff]
        %v506 = vld [vmem:[%s2 + $0x120] sm:$0xff]
        %v507 = vld [vmem:[%s2 + $0x128] sm:$0xff]
        %v508 = vld [vmem:[%s2 + $0x130] sm:$0xff]
        %v509 = vld [vmem:[%s2 + $0x138] sm:$0xff]
        %v510 = vld [vmem:[%s2 + $0x140] sm:$0xff]
        %v511 = vld [vmem:[%s2 + $0x148] sm:$0xff]
        %v512 = vld [vmem:[%s2 + $0x150] sm:$0xff]
        %v513 = vld [vmem:[%s2 + $0x158] sm:$0xff]
        %v514 = vld [vmem:[%s2 + $0x160] sm:$0xff]
        %v515 = vld [vmem:[%s2 + $0x168] sm:$0xff]
        %v516 = vld [vmem:[%s2 + $0x170] sm:$0xff]
        %v517 = vld [vmem:[%s2 + $0x178] sm:$0xff]
        %v518 = vld [vmem:[%s2 + $0x180] sm:$0xff]
        %v519 = vld [vmem:[%s2 + $0x188] sm:$0xff]
        %v520 = vld [vmem:[%s2 + $0x190] sm:$0xff]
        %v521 = vld [vmem:[%s2 + $0x198] sm:$0xff]
        %v522 = vld [vmem:[%s2 + $0x1a0] sm:$0xff]
        %v523 = vld [vmem:[%s2 + $0x1a8] sm:$0xff]
        %v524 = vld [vmem:[%s2 + $0x1b0] sm:$0xff]
        %v525 = vld [vmem:[%s2 + $0x1b8] sm:$0xff]
        %v526 = vld [vmem:[%s2 + $0x1c0] sm:$0xff]
        %v527 = vld [vmem:[%s2 + $0x1c8] sm:$0xff]
        %v528 = vld [vmem:[%s2 + $0x1d0] sm:$0xff]
        %v529 = vld [vmem:[%s2 + $0x1d8] sm:$0xff]
        %v530 = vld [vmem:[%s2 + $0x1e0] sm:$0xff]
        %v531 = vld [vmem:[%s2 + $0x1e8] sm:$0xff]
        %v532 = vld [vmem:[%s2 + $0x1f0] sm:$0xff]
        %v533 = vld [vmem:[%s2 + $0x1f8] sm:$0xff]
        %v534 = vld [vmem:[%s2 + $0x200] sm:$0xff]
        %v535 = vld [vmem:[%s2 + $0x208] sm:$0xff]
        %v536 = vld [vmem:[%s2 + $0x210] sm:$0xff]
        %v537 = vld [vmem:[%s2 + $0x218] sm:$0xff]
        %v538 = vld [vmem:[%s2 + $0x220] sm:$0xff]
        %v539 = vld [vmem:[%s2 + $0x228] sm:$0xff]
        %v540 = vld [vmem:[%s2 + $0x230] sm:$0xff]
        %v541 = vld [vmem:[%s2 + $0x238] sm:$0xff]
        %v542 = vld [vmem:[%s2 + $0x240] sm:$0xff]
        %v543 = vld [vmem:[%s2 + $0x248] sm:$0xff]
        %v544 = vld [vmem:[%s2 + $0x250] sm:$0xff]
        %v545 = vld [vmem:[%s2 + $0x258] sm:$0xff]
        %v546 = vld [vmem:[%s2 + $0x260] sm:$0xff]
        %v547 = vld [vmem:[%s2 + $0x268] sm:$0xff]
        %v548 = vld [vmem:[%s2 + $0x270] sm:$0xff]
        %v549 = vld [vmem:[%s2 + $0x278] sm:$0xff]
        %v550 = vld [vmem:[%s2 + $0x280] sm:$0xff]
        %v551 = vld [vmem:[%s2 + $0x288] sm:$0xff]
        %v552 = vld [vmem:[%s2 + $0x290] sm:$0xff]
        %v553 = vld [vmem:[%s2 + $0x298] sm:$0xff]
        %v554 = vld [vmem:[%s2 + $0x2a0] sm:$0xff]
        %v555 = vld [vmem:[%s2 + $0x2a8] sm:$0xff]
        %v556 = vld [vmem:[%s2 + $0x2b0] sm:$0xff]
        %v557 = vld [vmem:[%s2 + $0x2b8] sm:$0xff]
        %v558 = vld [vmem:[%s2 + $0x2c0] sm:$0xff]
        %v559 = vld [vmem:[%s2 + $0x2c8] sm:$0xff]
        %v560 = vld [vmem:[%s2 + $0x2d0] sm:$0xff]
        %v561 = vld [vmem:[%s2 + $0x2d8] sm:$0xff]
        %v562 = vld [vmem:[%s2 + $0x2e0] sm:$0xff]
        %v563 = vld [vmem:[%s2 + $0x2e8] sm:$0xff]
        %v564 = vld [vmem:[%s2 + $0x2f0] sm:$0xff]
        %v565 = vld [vmem:[%s2 + $0x2f8] sm:$0xff]
        %v566 = vld [vmem:[%s2 + $0x300] sm:$0xff]
        %v567 = vld [vmem:[%s2 + $0x308] sm:$0xff]
        %v568 = vld [vmem:[%s3] sm:$0x3]
        %v570 = vperm.slane %v568, 0
        %v571 = vperm.slane %v568, 1
        %v672 = vunpack.c.l.b16 %v470
        %v673 = vunpack.c.h.b16 %v470
        %v674 = vunpack.c.l.b16 %v471
        %v675 = vunpack.c.h.b16 %v471
        %v676 = vunpack.c.l.b16 %v472
        %v677 = vunpack.c.h.b16 %v472
        %v678 = vunpack.c.l.b16 %v473
        %v679 = vunpack.c.h.b16 %v473
        %v680 = vunpack.c.l.b16 %v474
        %v681 = vunpack.c.h.b16 %v474
        %v682 = vunpack.c.l.b16 %v475
        %v683 = vunpack.c.h.b16 %v475
        %v684 = vunpack.c.l.b16 %v476
        %v685 = vunpack.c.h.b16 %v476
        %v686 = vunpack.c.l.b16 %v477
        %v687 = vunpack.c.h.b16 %v477
        %v688 = vunpack.c.l.b16 %v478
        %v689 = vunpack.c.h.b16 %v478
        %v690 = vunpack.c.l.b16 %v479
        %v691 = vunpack.c.h.b16 %v479
        %v692 = vunpack.c.l.b16 %v480
        %v693 = vunpack.c.h.b16 %v480
        %v694 = vunpack.c.l.b16 %v481
        %v695 = vunpack.c.h.b16 %v481
        %v696 = vunpack.c.l.b16 %v482
        %v697 = vunpack.c.h.b16 %v482
        %v698 = vunpack.c.l.b16 %v483
        %v699 = vunpack.c.h.b16 %v483
        %v700 = vunpack.c.l.b16 %v484
        %v701 = vunpack.c.h.b16 %v484
        %v702 = vunpack.c.l.b16 %v485
        %v703 = vunpack.c.h.b16 %v485
        %v704 = vunpack.c.l.b16 %v486
        %v705 = vunpack.c.h.b16 %v486
        %v706 = vunpack.c.l.b16 %v487
        %v707 = vunpack.c.h.b16 %v487
        %v708 = vunpack.c.l.b16 %v488
        %v709 = vunpack.c.h.b16 %v488
        %v710 = vunpack.c.l.b16 %v489
        %v711 = vunpack.c.h.b16 %v489
        %v712 = vunpack.c.l.b16 %v490
        %v713 = vunpack.c.h.b16 %v490
        %v714 = vunpack.c.l.b16 %v491
        %v715 = vunpack.c.h.b16 %v491
        %v716 = vunpack.c.l.b16 %v492
        %v717 = vunpack.c.h.b16 %v492
        %v718 = vunpack.c.l.b16 %v493
        %v719 = vunpack.c.h.b16 %v493
        %v720 = vunpack.c.l.b16 %v494
        %v721 = vunpack.c.h.b16 %v494
        %v722 = vunpack.c.l.b16 %v495
        %v723 = vunpack.c.h.b16 %v495
        %v724 = vunpack.c.l.b16 %v496
        %v725 = vunpack.c.h.b16 %v496
        %v726 = vunpack.c.l.b16 %v497
        %v727 = vunpack.c.h.b16 %v497
        %v728 = vunpack.c.l.b16 %v498
        %v729 = vunpack.c.h.b16 %v498
        %v730 = vunpack.c.l.b16 %v499
        %v731 = vunpack.c.h.b16 %v499
        %v732 = vunpack.c.l.b16 %v500
        %v733 = vunpack.c.h.b16 %v500
        %v734 = vunpack.c.l.b16 %v501
        %v735 = vunpack.c.h.b16 %v501
        %v736 = vunpack.c.l.b16 %v502
        %v737 = vunpack.c.h.b16 %v502
        %v738 = vunpack.c.l.b16 %v503
        %v739 = vunpack.c.h.b16 %v503
        %v740 = vunpack.c.l.b16 %v504
        %v741 = vunpack.c.h.b16 %v504
        %v742 = vunpack.c.l.b16 %v505
        %v743 = vunpack.c.h.b16 %v505
        %v744 = vunpack.c.l.b16 %v506
        %v745 = vunpack.c.h.b16 %v506
        %v746 = vunpack.c.l.b16 %v507
        %v747 = vunpack.c.h.b16 %v507
        %v748 = vunpack.c.l.b16 %v508
        %v749 = vunpack.c.h.b16 %v508
        %v750 = vunpack.c.l.b16 %v509
        %v751 = vunpack.c.h.b16 %v509
        %v752 = vunpack.c.l.b16 %v510
        %v753 = vunpack.c.h.b16 %v510
        %v754 = vunpack.c.l.b16 %v511
        %v755 = vunpack.c.h.b16 %v511
        %v756 = vunpack.c.l.b16 %v512
        %v757 = vunpack.c.h.b16 %v512
        %v758 = vunpack.c.l.b16 %v513
        %v759 = vunpack.c.h.b16 %v513
        %v760 = vunpack.c.l.b16 %v514
        %v761 = vunpack.c.h.b16 %v514
        %v762 = vunpack.c.l.b16 %v515
        %v763 = vunpack.c.h.b16 %v515
        %v764 = vunpack.c.l.b16 %v516
        %v765 = vunpack.c.h.b16 %v516
        %v766 = vunpack.c.l.b16 %v517
        %v767 = vunpack.c.h.b16 %v517
        %v768 = vunpack.c.l.b16 %v518
        %v769 = vunpack.c.h.b16 %v518
        %v770 = vunpack.c.l.b16 %v519
        %v771 = vunpack.c.h.b16 %v519
        %v772 = vunpack.c.l.b16 %v520
        %v773 = vunpack.c.h.b16 %v520
        %v774 = vunpack.c.l.b16 %v521
        %v775 = vunpack.c.h.b16 %v521
        %v776 = vunpack.c.l.b16 %v522
        %v777 = vunpack.c.h.b16 %v522
        %v778 = vunpack.c.l.b16 %v523
        %v779 = vunpack.c.h.b16 %v523
        %v780 = vunpack.c.l.b16 %v524
        %v781 = vunpack.c.h.b16 %v524
        %v782 = vunpack.c.l.b16 %v525
        %v783 = vunpack.c.h.b16 %v525
        %v784 = vunpack.c.l.b16 %v526
        %v785 = vunpack.c.h.b16 %v526
        %v786 = vunpack.c.l.b16 %v527
        %v787 = vunpack.c.h.b16 %v527
        %v788 = vunpack.c.l.b16 %v528
        %v789 = vunpack.c.h.b16 %v528
        %v790 = vunpack.c.l.b16 %v529
        %v791 = vunpack.c.h.b16 %v529
        %v792 = vunpack.c.l.b16 %v530
        %v793 = vunpack.c.h.b16 %v530
        %v794 = vunpack.c.l.b16 %v531
        %v795 = vunpack.c.h.b16 %v531
        %v796 = vunpack.c.l.b16 %v532
        %v797 = vunpack.c.h.b16 %v532
        %v798 = vunpack.c.l.b16 %v533
        %v799 = vunpack.c.h.b16 %v533
        %v800 = vunpack.c.l.b16 %v534
        %v801 = vunpack.c.h.b16 %v534
        %v802 = vunpack.c.l.b16 %v535
        %v803 = vunpack.c.h.b16 %v535
        %v804 = vunpack.c.l.b16 %v536
        %v805 = vunpack.c.h.b16 %v536
        %v806 = vunpack.c.l.b16 %v537
        %v807 = vunpack.c.h.b16 %v537
        %v808 = vunpack.c.l.b16 %v538
        %v809 = vunpack.c.h.b16 %v538
        %v810 = vunpack.c.l.b16 %v539
        %v811 = vunpack.c.h.b16 %v539
        %v812 = vunpack.c.l.b16 %v540
        %v813 = vunpack.c.h.b16 %v540
        %v814 = vunpack.c.l.b16 %v541
        %v815 = vunpack.c.h.b16 %v541
        %v816 = vunpack.c.l.b16 %v542
        %v817 = vunpack.c.h.b16 %v542
        %v818 = vunpack.c.l.b16 %v543
        %v819 = vunpack.c.h.b16 %v543
        %v820 = vunpack.c.l.b16 %v544
        %v821 = vunpack.c.h.b16 %v544
        %v822 = vunpack.c.l.b16 %v545
        %v823 = vunpack.c.h.b16 %v545
        %v824 = vunpack.c.l.b16 %v546
        %v825 = vunpack.c.h.b16 %v546
        %v826 = vunpack.c.l.b16 %v547
        %v827 = vunpack.c.h.b16 %v547
        %v828 = vunpack.c.l.b16 %v548
        %v829 = vunpack.c.h.b16 %v548
        %v830 = vunpack.c.l.b16 %v549
        %v831 = vunpack.c.h.b16 %v549
        %v832 = vunpack.c.l.b16 %v550
        %v833 = vunpack.c.h.b16 %v550
        %v834 = vunpack.c.l.b16 %v551
        %v835 = vunpack.c.h.b16 %v551
        %v836 = vunpack.c.l.b16 %v552
        %v837 = vunpack.c.h.b16 %v552
        %v838 = vunpack.c.l.b16 %v553
        %v839 = vunpack.c.h.b16 %v553
        %v840 = vunpack.c.l.b16 %v554
        %v841 = vunpack.c.h.b16 %v554
        %v842 = vunpack.c.l.b16 %v555
        %v843 = vunpack.c.h.b16 %v555
        %v844 = vunpack.c.l.b16 %v556
        %v845 = vunpack.c.h.b16 %v556
        %v846 = vunpack.c.l.b16 %v557
        %v847 = vunpack.c.h.b16 %v557
        %v848 = vunpack.c.l.b16 %v558
        %v849 = vunpack.c.h.b16 %v558
        %v850 = vunpack.c.l.b16 %v559
        %v851 = vunpack.c.h.b16 %v559
        %v852 = vunpack.c.l.b16 %v560
        %v853 = vunpack.c.h.b16 %v560
        %v854 = vunpack.c.l.b16 %v561
        %v855 = vunpack.c.h.b16 %v561
        %v856 = vunpack.c.l.b16 %v562
        %v857 = vunpack.c.h.b16 %v562
        %v858 = vunpack.c.l.b16 %v563
        %v859 = vunpack.c.h.b16 %v563
        %v860 = vunpack.c.l.b16 %v564
        %v861 = vunpack.c.h.b16 %v564
        %v862 = vunpack.c.l.b16 %v565
        %v863 = vunpack.c.h.b16 %v565
        %v864 = vunpack.c.l.b16 %v566
        %v865 = vunpack.c.h.b16 %v566
        %v866 = vunpack.c.l.b16 %v567
        %v867 = vunpack.c.h.b16 %v567
        %v868 = vpack.c.b16 %v674, %v672
        %v869 = vpack.c.b16 %v675, %v673
        %v870 = vpack.c.b16 %v678, %v676
        %v871 = vpack.c.b16 %v679, %v677
        %v872 = vpack.c.b16 %v682, %v680
        %v873 = vpack.c.b16 %v683, %v681
        %v874 = vpack.c.b16 %v686, %v684
        %v875 = vpack.c.b16 %v687, %v685
        %v876 = vpack.c.b16 %v690, %v688
        %v877 = vpack.c.b16 %v691, %v689
        %v878 = vpack.c.b16 %v694, %v692
        %v879 = vpack.c.b16 %v695, %v693
        %v880 = vpack.c.b16 %v698, %v696
        %v881 = vpack.c.b16 %v699, %v697
        %v882 = vpack.c.b16 %v702, %v700
        %v883 = vpack.c.b16 %v703, %v701
        %v884 = vpack.c.b16 %v706, %v704
        %v885 = vpack.c.b16 %v707, %v705
        %v886 = vpack.c.b16 %v710, %v708
        %v887 = vpack.c.b16 %v711, %v709
        %v888 = vpack.c.b16 %v714, %v712
        %v889 = vpack.c.b16 %v715, %v713
        %v890 = vpack.c.b16 %v718, %v716
        %v891 = vpack.c.b16 %v719, %v717
        %v892 = vpack.c.b16 %v722, %v720
        %v893 = vpack.c.b16 %v723, %v721
        %v894 = vpack.c.b16 %v726, %v724
        %v895 = vpack.c.b16 %v727, %v725
        %v896 = vpack.c.b16 %v730, %v728
        %v897 = vpack.c.b16 %v731, %v729
        %v898 = vpack.c.b16 %v734, %v732
        %v899 = vpack.c.b16 %v735, %v733
        %v900 = vpack.c.b16 %v738, %v736
        %v901 = vpack.c.b16 %v739, %v737
        %v902 = vpack.c.b16 %v742, %v740
        %v903 = vpack.c.b16 %v743, %v741
        %v904 = vpack.c.b16 %v746, %v744
        %v905 = vpack.c.b16 %v747, %v745
        %v906 = vpack.c.b16 %v750, %v748
        %v907 = vpack.c.b16 %v751, %v749
        %v908 = vpack.c.b16 %v754, %v752
        %v909 = vpack.c.b16 %v755, %v753
        %v910 = vpack.c.b16 %v758, %v756
        %v911 = vpack.c.b16 %v759, %v757
        %v912 = vpack.c.b16 %v762, %v760
        %v913 = vpack.c.b16 %v763, %v761
        %v914 = vpack.c.b16 %v766, %v764
        %v915 = vpack.c.b16 %v767, %v765
        %v916 = vpack.c.b16 %v770, %v768
        %v917 = vpack.c.b16 %v771, %v769
        %v918 = vpack.c.b16 %v774, %v772
        %v919 = vpack.c.b16 %v775, %v773
        %v920 = vpack.c.b16 %v778, %v776
        %v921 = vpack.c.b16 %v779, %v777
        %v922 = vpack.c.b16 %v782, %v780
        %v923 = vpack.c.b16 %v783, %v781
        %v924 = vpack.c.b16 %v786, %v784
        %v925 = vpack.c.b16 %v787, %v785
        %v926 = vpack.c.b16 %v790, %v788
        %v927 = vpack.c.b16 %v791, %v789
        %v928 = vpack.c.b16 %v794, %v792
        %v929 = vpack.c.b16 %v795, %v793
        %v930 = vpack.c.b16 %v798, %v796
        %v931 = vpack.c.b16 %v799, %v797
        %v932 = vpack.c.b16 %v802, %v800
        %v933 = vpack.c.b16 %v803, %v801
        %v934 = vpack.c.b16 %v806, %v804
        %v935 = vpack.c.b16 %v807, %v805
        %v936 = vpack.c.b16 %v810, %v808
        %v937 = vpack.c.b16 %v811, %v809
        %v938 = vpack.c.b16 %v814, %v812
        %v939 = vpack.c.b16 %v815, %v813
        %v940 = vpack.c.b16 %v818, %v816
        %v941 = vpack.c.b16 %v819, %v817
        %v942 = vpack.c.b16 %v822, %v820
        %v943 = vpack.c.b16 %v823, %v821
        %v944 = vpack.c.b16 %v826, %v824
        %v945 = vpack.c.b16 %v827, %v825
        %v946 = vpack.c.b16 %v830, %v828
        %v947 = vpack.c.b16 %v831, %v829
        %v948 = vpack.c.b16 %v834, %v832
        %v949 = vpack.c.b16 %v835, %v833
        %v950 = vpack.c.b16 %v838, %v836
        %v951 = vpack.c.b16 %v839, %v837
        %v952 = vpack.c.b16 %v842, %v840
        %v953 = vpack.c.b16 %v843, %v841
        %v954 = vpack.c.b16 %v846, %v844
        %v955 = vpack.c.b16 %v847, %v845
        %v956 = vpack.c.b16 %v850, %v848
        %v957 = vpack.c.b16 %v851, %v849
        %v958 = vpack.c.b16 %v854, %v852
        %v959 = vpack.c.b16 %v855, %v853
        %v960 = vpack.c.b16 %v858, %v856
        %v961 = vpack.c.b16 %v859, %v857
        %v962 = vpack.c.b16 %v862, %v860
        %v963 = vpack.c.b16 %v863, %v861
        %v964 = vpack.c.b16 %v866, %v864
        %v965 = vpack.c.b16 %v867, %v865
        %vm1064 = vcmask 130048
        %v1066 = vsel %vm1064, %v462, 0
        %v1069 = vsel %vm1064, %v469, 0
        %1071 = vmatpush.bf16.msra.mxu0 %v882
        %1072 = vmatpush.bf16.msra.mxu0 %v880
        %1073 = vmatpush.bf16.msra.mxu0 %v878
        %1074 = vmatpush.bf16.msra.mxu0 %v876
        %1075 = vmatpush.bf16.msra.mxu0 %v874
        %1076 = vmatpush.bf16.msra.mxu0 %v872
        %1077 = vmatpush.bf16.msra.mxu0 %v870
        %1078 = vmatpush.bf16.msra.mxu0 %v868
        %1079 = vmatmul.bf16.gmra.mxu0 %v456
        %v1080 = vpop.f32.mrf.mxu0
        %v1081 = vadd.f32 %v570, %v1080
        %v1082 = vpop.f32.mrf.mxu0
        %v1083 = vadd.f32 %v570, %v1082
        %1084 = vmatmul.bf16.gmra.mxu0 %v463
        %v1085 = vpop.f32.mrf.mxu0
        %v1086 = vadd.f32 %v570, %v1085
        %v1087 = vpop.f32.mrf.mxu0
        %v1088 = vadd.f32 %v570, %v1087
        %1089 = vdwg.mxu0
        %1090 = vmatpush.bf16.msra.mxu0 %v898
        %1091 = vmatpush.bf16.msra.mxu0 %v896
        %1092 = vmatpush.bf16.msra.mxu0 %v894
        %1093 = vmatpush.bf16.msra.mxu0 %v892
        %1094 = vmatpush.bf16.msra.mxu0 %v890
        %1095 = vmatpush.bf16.msra.mxu0 %v888
        %1096 = vmatpush.bf16.msra.mxu0 %v886
        %1097 = vmatpush.bf16.msra.mxu0 %v884
        %1098 = vmatmul.bf16.gmra.mxu0 %v457
        %v1099 = vpop.f32.mrf.mxu0
        %v1100 = vadd.f32 %v1081, %v1099
        %v1101 = vpop.f32.mrf.mxu0
        %v1102 = vadd.f32 %v1083, %v1101
        %1103 = vmatmul.bf16.gmra.mxu0 %v464
        %v1104 = vpop.f32.mrf.mxu0
        %v1105 = vadd.f32 %v1086, %v1104
        %v1106 = vpop.f32.mrf.mxu0
        %v1107 = vadd.f32 %v1088, %v1106
        %1108 = vdwg.mxu0
        %1109 = vmatpush.bf16.msra.mxu0 %v914
        %1110 = vmatpush.bf16.msra.mxu0 %v912
        %1111 = vmatpush.bf16.msra.mxu0 %v910
        %1112 = vmatpush.bf16.msra.mxu0 %v908
        %1113 = vmatpush.bf16.msra.mxu0 %v906
        %1114 = vmatpush.bf16.msra.mxu0 %v904
        %1115 = vmatpush.bf16.msra.mxu0 %v902
        %1116 = vmatpush.bf16.msra.mxu0 %v900
        %1117 = vmatmul.bf16.gmra.mxu0 %v458
        %v1118 = vpop.f32.mrf.mxu0
        %v1119 = vadd.f32 %v1100, %v1118
        %v1120 = vpop.f32.mrf.mxu0
        %v1121 = vadd.f32 %v1102, %v1120
        %1122 = vmatmul.bf16.gmra.mxu0 %v465
        %v1123 = vpop.f32.mrf.mxu0
        %v1124 = vadd.f32 %v1105, %v1123
        %v1125 = vpop.f32.mrf.mxu0
        %v1126 = vadd.f32 %v1107, %v1125
        %1127 = vdwg.mxu0
        %1128 = vmatpush.bf16.msra.mxu0 %v930
        %1129 = vmatpush.bf16.msra.mxu0 %v928
        %1130 = vmatpush.bf16.msra.mxu0 %v926
        %1131 = vmatpush.bf16.msra.mxu0 %v924
        %1132 = vmatpush.bf16.msra.mxu0 %v922
        %1133 = vmatpush.bf16.msra.mxu0 %v920
        %1134 = vmatpush.bf16.msra.mxu0 %v918
        %1135 = vmatpush.bf16.msra.mxu0 %v916
        %1136 = vmatmul.bf16.gmra.mxu0 %v459
        %v1137 = vpop.f32.mrf.mxu0
        %v1138 = vadd.f32 %v1119, %v1137
        %v1139 = vpop.f32.mrf.mxu0
        %v1140 = vadd.f32 %v1121, %v1139
        %1141 = vmatmul.bf16.gmra.mxu0 %v466
        %v1142 = vpop.f32.mrf.mxu0
        %v1143 = vadd.f32 %v1124, %v1142
        %v1144 = vpop.f32.mrf.mxu0
        %v1145 = vadd.f32 %v1126, %v1144
        %1146 = vdwg.mxu0
        %1147 = vmatpush.bf16.msra.mxu0 %v946
        %1148 = vmatpush.bf16.msra.mxu0 %v944
        %1149 = vmatpush.bf16.msra.mxu0 %v942
        %1150 = vmatpush.bf16.msra.mxu0 %v940
        %1151 = vmatpush.bf16.msra.mxu0 %v938
        %1152 = vmatpush.bf16.msra.mxu0 %v936
        %1153 = vmatpush.bf16.msra.mxu0 %v934
        %1154 = vmatpush.bf16.msra.mxu0 %v932
        %1155 = vmatmul.bf16.gmra.mxu0 %v460
        %v1156 = vpop.f32.mrf.mxu0
        %v1157 = vadd.f32 %v1138, %v1156
        %v1158 = vpop.f32.mrf.mxu0
        %v1159 = vadd.f32 %v1140, %v1158
        %1160 = vmatmul.bf16.gmra.mxu0 %v467
        %v1161 = vpop.f32.mrf.mxu0
        %v1162 = vadd.f32 %v1143, %v1161
        %v1163 = vpop.f32.mrf.mxu0
        %v1164 = vadd.f32 %v1145, %v1163
        %1165 = vdwg.mxu0
        %1166 = vmatpush.bf16.msra.mxu0 %v962
        %1167 = vmatpush.bf16.msra.mxu0 %v960
        %1168 = vmatpush.bf16.msra.mxu0 %v958
        %1169 = vmatpush.bf16.msra.mxu0 %v956
        %1170 = vmatpush.bf16.msra.mxu0 %v954
        %1171 = vmatpush.bf16.msra.mxu0 %v952
        %1172 = vmatpush.bf16.msra.mxu0 %v950
        %1173 = vmatpush.bf16.msra.mxu0 %v948
        %1174 = vmatmul.bf16.gmra.mxu0 %v461
        %v1175 = vpop.f32.mrf.mxu0
        %v1176 = vadd.f32 %v1157, %v1175
        %v1177 = vpop.f32.mrf.mxu0
        %v1178 = vadd.f32 %v1159, %v1177
        %1179 = vmatmul.bf16.gmra.mxu0 %v468
        %v1180 = vpop.f32.mrf.mxu0
        %v1181 = vadd.f32 %v1162, %v1180
        %v1182 = vpop.f32.mrf.mxu0
        %v1183 = vadd.f32 %v1164, %v1182
        %1184 = vdwg.mxu0
        %1185 = vmatpush.bf16.msra.mxu0 0
        %1186 = vmatpush.bf16.msra.mxu0 0
        %1187 = vmatpush.bf16.msra.mxu0 0
        %1188 = vmatpush.bf16.msra.mxu0 0
        %1189 = vmatpush.bf16.msra.mxu0 0
        %1190 = vmatpush.bf16.msra.mxu0 0
        %1191 = vmatpush.bf16.msra.mxu0 0
        %1192 = vmatpush.bf16.msra.mxu0 %v964
        %1193 = vmatmul.bf16.gmra.mxu0 %v1066
        %v1194 = vpop.f32.mrf.mxu0
        %v1195 = vadd.f32 %v1176, %v1194
        %v1196 = vpop.f32.mrf.mxu0
        %v1197 = vadd.f32 %v1178, %v1196
        %1198 = vmatmul.bf16.gmra.mxu0 %v1069
        %v1199 = vpop.f32.mrf.mxu0
        %v1200 = vadd.f32 %v1181, %v1199
        %v1201 = vpop.f32.mrf.mxu0
        %v1202 = vadd.f32 %v1183, %v1201
        %1203 = vdwg.mxu0
        %1204 = vmatpush.bf16.msra.mxu0 %v883
        %1205 = vmatpush.bf16.msra.mxu0 %v881
        %1206 = vmatpush.bf16.msra.mxu0 %v879
        %1207 = vmatpush.bf16.msra.mxu0 %v877
        %1208 = vmatpush.bf16.msra.mxu0 %v875
        %1209 = vmatpush.bf16.msra.mxu0 %v873
        %1210 = vmatpush.bf16.msra.mxu0 %v871
        %1211 = vmatpush.bf16.msra.mxu0 %v869
        %1212 = vmatmul.bf16.gmra.mxu0 %v456
        %v1213 = vpop.f32.mrf.mxu0
        %v1214 = vadd.f32 %v571, %v1213
        %v1215 = vpop.f32.mrf.mxu0
        %v1216 = vadd.f32 %v571, %v1215
        %1217 = vmatmul.bf16.gmra.mxu0 %v463
        %v1218 = vpop.f32.mrf.mxu0
        %v1219 = vadd.f32 %v571, %v1218
        %v1220 = vpop.f32.mrf.mxu0
        %v1221 = vadd.f32 %v571, %v1220
        %1222 = vdwg.mxu0
        %1223 = vmatpush.bf16.msra.mxu0 %v899
        %1224 = vmatpush.bf16.msra.mxu0 %v897
        %1225 = vmatpush.bf16.msra.mxu0 %v895
        %1226 = vmatpush.bf16.msra.mxu0 %v893
        %1227 = vmatpush.bf16.msra.mxu0 %v891
        %1228 = vmatpush.bf16.msra.mxu0 %v889
        %1229 = vmatpush.bf16.msra.mxu0 %v887
        %1230 = vmatpush.bf16.msra.mxu0 %v885
        %1231 = vmatmul.bf16.gmra.mxu0 %v457
        %v1232 = vpop.f32.mrf.mxu0
        %v1233 = vadd.f32 %v1214, %v1232
        %v1234 = vpop.f32.mrf.mxu0
        %v1235 = vadd.f32 %v1216, %v1234
        %1236 = vmatmul.bf16.gmra.mxu0 %v464
        %v1237 = vpop.f32.mrf.mxu0
        %v1238 = vadd.f32 %v1219, %v1237
        %v1239 = vpop.f32.mrf.mxu0
        %v1240 = vadd.f32 %v1221, %v1239
        %1241 = vdwg.mxu0
        %1242 = vmatpush.bf16.msra.mxu0 %v915
        %1243 = vmatpush.bf16.msra.mxu0 %v913
        %1244 = vmatpush.bf16.msra.mxu0 %v911
        %1245 = vmatpush.bf16.msra.mxu0 %v909
        %1246 = vmatpush.bf16.msra.mxu0 %v907
        %1247 = vmatpush.bf16.msra.mxu0 %v905
        %1248 = vmatpush.bf16.msra.mxu0 %v903
        %1249 = vmatpush.bf16.msra.mxu0 %v901
        %1250 = vmatmul.bf16.gmra.mxu0 %v458
        %v1251 = vpop.f32.mrf.mxu0
        %v1252 = vadd.f32 %v1233, %v1251
        %v1253 = vpop.f32.mrf.mxu0
        %v1254 = vadd.f32 %v1235, %v1253
        %1255 = vmatmul.bf16.gmra.mxu0 %v465
        %v1256 = vpop.f32.mrf.mxu0
        %v1257 = vadd.f32 %v1238, %v1256
        %v1258 = vpop.f32.mrf.mxu0
        %v1259 = vadd.f32 %v1240, %v1258
        %1260 = vdwg.mxu0
        %1261 = vmatpush.bf16.msra.mxu0 %v931
        %1262 = vmatpush.bf16.msra.mxu0 %v929
        %1263 = vmatpush.bf16.msra.mxu0 %v927
        %1264 = vmatpush.bf16.msra.mxu0 %v925
        %1265 = vmatpush.bf16.msra.mxu0 %v923
        %1266 = vmatpush.bf16.msra.mxu0 %v921
        %1267 = vmatpush.bf16.msra.mxu0 %v919
        %1268 = vmatpush.bf16.msra.mxu0 %v917
        %1269 = vmatmul.bf16.gmra.mxu0 %v459
        %v1270 = vpop.f32.mrf.mxu0
        %v1271 = vadd.f32 %v1252, %v1270
        %v1272 = vpop.f32.mrf.mxu0
        %v1273 = vadd.f32 %v1254, %v1272
        %1274 = vmatmul.bf16.gmra.mxu0 %v466
        %v1275 = vpop.f32.mrf.mxu0
        %v1276 = vadd.f32 %v1257, %v1275
        %v1277 = vpop.f32.mrf.mxu0
        %v1278 = vadd.f32 %v1259, %v1277
        %1279 = vdwg.mxu0
        %1280 = vmatpush.bf16.msra.mxu0 %v947
        %1281 = vmatpush.bf16.msra.mxu0 %v945
        %1282 = vmatpush.bf16.msra.mxu0 %v943
        %1283 = vmatpush.bf16.msra.mxu0 %v941
        %1284 = vmatpush.bf16.msra.mxu0 %v939
        %1285 = vmatpush.bf16.msra.mxu0 %v937
        %1286 = vmatpush.bf16.msra.mxu0 %v935
        %1287 = vmatpush.bf16.msra.mxu0 %v933
        %1288 = vmatmul.bf16.gmra.mxu0 %v460
        %v1289 = vpop.f32.mrf.mxu0
        %v1290 = vadd.f32 %v1271, %v1289
        %v1291 = vpop.f32.mrf.mxu0
        %v1292 = vadd.f32 %v1273, %v1291
        %1293 = vmatmul.bf16.gmra.mxu0 %v467
        %v1294 = vpop.f32.mrf.mxu0
        %v1295 = vadd.f32 %v1276, %v1294
        %v1296 = vpop.f32.mrf.mxu0
        %v1297 = vadd.f32 %v1278, %v1296
        %1298 = vdwg.mxu0
        %1299 = vmatpush.bf16.msra.mxu0 %v963
        %1300 = vmatpush.bf16.msra.mxu0 %v961
        %1301 = vmatpush.bf16.msra.mxu0 %v959
        %1302 = vmatpush.bf16.msra.mxu0 %v957
        %1303 = vmatpush.bf16.msra.mxu0 %v955
        %1304 = vmatpush.bf16.msra.mxu0 %v953
        %1305 = vmatpush.bf16.msra.mxu0 %v951
        %1306 = vmatpush.bf16.msra.mxu0 %v949
        %1307 = vmatmul.bf16.gmra.mxu0 %v461
        %v1308 = vpop.f32.mrf.mxu0
        %v1309 = vadd.f32 %v1290, %v1308
        %v1310 = vpop.f32.mrf.mxu0
        %v1311 = vadd.f32 %v1292, %v1310
        %1312 = vmatmul.bf16.gmra.mxu0 %v468
        %v1313 = vpop.f32.mrf.mxu0
        %v1314 = vadd.f32 %v1295, %v1313
        %v1315 = vpop.f32.mrf.mxu0
        %v1316 = vadd.f32 %v1297, %v1315
        %1317 = vdwg.mxu0
        %1318 = vmatpush.bf16.msra.mxu0 0
        %1319 = vmatpush.bf16.msra.mxu0 0
        %1320 = vmatpush.bf16.msra.mxu0 0
        %1321 = vmatpush.bf16.msra.mxu0 0
        %1322 = vmatpush.bf16.msra.mxu0 0
        %1323 = vmatpush.bf16.msra.mxu0 0
        %1324 = vmatpush.bf16.msra.mxu0 0
        %1325 = vmatpush.bf16.msra.mxu0 %v965
        %1326 = vmatmul.bf16.gmra.mxu0 %v1066
        %v1327 = vpop.f32.mrf.mxu0
        %v1328 = vadd.f32 %v1309, %v1327
        %v1329 = vpop.f32.mrf.mxu0
        %v1330 = vadd.f32 %v1311, %v1329
        %1331 = vmatmul.bf16.gmra.mxu0 %v1069
        %v1332 = vpop.f32.mrf.mxu0
        %v1333 = vadd.f32 %v1314, %v1332
        %v1334 = vpop.f32.mrf.mxu0
        %v1335 = vadd.f32 %v1316, %v1334
        %1336 = vdwg.mxu0
        %v1337 = vmax.f32 %v1195, 0.0
        %v1338 = vmax.f32 %v1328, 0.0
        %v1339 = vmax.f32 %v1197, 0.0
        %v1340 = vmax.f32 %v1330, 0.0
        %v1341 = vmax.f32 %v1200, 0.0
        %v1342 = vmax.f32 %v1333, 0.0
        %v1343 = vmax.f32 %v1202, 0.0
        %v1344 = vmax.f32 %v1335, 0.0
        %v1345 = vpack.c.bf16 %v1339, %v1337
        %v1346 = vpack.c.bf16 %v1340, %v1338
        %v1347 = vpack.c.bf16 %v1343, %v1341
        %v1348 = vpack.c.bf16 %v1344, %v1342
        %v1349 = vld [vmem:[%s4] sm:$0xf]
        %v1350 = vld [vmem:[%s4 + $0x4] sm:$0xf]
        %v1351 = vld [vmem:[%s4 + $0x8] sm:$0xf]
        %v1352 = vld [vmem:[%s4 + $0xc] sm:$0xf]
        %v1353 = vld [vmem:[%s4 + $0x10] sm:$0xf]
        %v1354 = vld [vmem:[%s4 + $0x14] sm:$0xf]
        %v1355 = vld [vmem:[%s4 + $0x18] sm:$0xf]
        %v1356 = vld [vmem:[%s4 + $0x1c] sm:$0xf]
        %v1357 = vld [vmem:[%s4 + $0x20] sm:$0xf]
        %v1358 = vld [vmem:[%s4 + $0x24] sm:$0xf]
        %v1359 = vld [vmem:[%s4 + $0x28] sm:$0xf]
        %v1360 = vld [vmem:[%s4 + $0x2c] sm:$0xf]
        %v1361 = vld [vmem:[%s4 + $0x30] sm:$0xf]
        %v1362 = vld [vmem:[%s4 + $0x34] sm:$0xf]
        %v1363 = vld [vmem:[%s4 + $0x38] sm:$0xf]
        %v1364 = vld [vmem:[%s4 + $0x3c] sm:$0xf]
        %v1365 = vld [vmem:[%s4 + $0x40] sm:$0xf]
        %v1366 = vld [vmem:[%s4 + $0x44] sm:$0xf]
        %v1367 = vld [vmem:[%s4 + $0x48] sm:$0xf]
        %v1368 = vld [vmem:[%s4 + $0x4c] sm:$0xf]
        %v1369 = vld [vmem:[%s4 + $0x50] sm:$0xf]
        %v1370 = vld [vmem:[%s4 + $0x54] sm:$0xf]
        %v1371 = vld [vmem:[%s4 + $0x58] sm:$0xf]
        %v1372 = vld [vmem:[%s4 + $0x5c] sm:$0xf]
        %v1373 = vld [vmem:[%s4 + $0x60] sm:$0xf]
        %v1374 = vld [vmem:[%s4 + $0x64] sm:$0xf]
        %v1375 = vld [vmem:[%s4 + $0x68] sm:$0xf]
        %v1376 = vld [vmem:[%s4 + $0x6c] sm:$0xf]
        %v1377 = vld [vmem:[%s4 + $0x70] sm:$0xf]
        %v1378 = vld [vmem:[%s4 + $0x74] sm:$0xf]
        %v1379 = vld [vmem:[%s4 + $0x78] sm:$0xf]
        %v1380 = vld [vmem:[%s4 + $0x7c] sm:$0xf]
        %v1381 = vld [vmem:[%s5] sm:$0x1]
        %v1383 = vperm.slane %v1381, 0
        %v1417 = vunpack.c.l.b16 %v1349
        %v1418 = vunpack.c.l.b16 %v1350
        %v1419 = vunpack.c.l.b16 %v1351
        %v1420 = vunpack.c.l.b16 %v1352
        %v1421 = vunpack.c.l.b16 %v1353
        %v1422 = vunpack.c.l.b16 %v1354
        %v1423 = vunpack.c.l.b16 %v1355
        %v1424 = vunpack.c.l.b16 %v1356
        %v1425 = vunpack.c.l.b16 %v1357
        %v1426 = vunpack.c.l.b16 %v1358
        %v1427 = vunpack.c.l.b16 %v1359
        %v1428 = vunpack.c.l.b16 %v1360
        %v1429 = vunpack.c.l.b16 %v1361
        %v1430 = vunpack.c.l.b16 %v1362
        %v1431 = vunpack.c.l.b16 %v1363
        %v1432 = vunpack.c.l.b16 %v1364
        %v1433 = vunpack.c.l.b16 %v1365
        %v1434 = vunpack.c.l.b16 %v1366
        %v1435 = vunpack.c.l.b16 %v1367
        %v1436 = vunpack.c.l.b16 %v1368
        %v1437 = vunpack.c.l.b16 %v1369
        %v1438 = vunpack.c.l.b16 %v1370
        %v1439 = vunpack.c.l.b16 %v1371
        %v1440 = vunpack.c.l.b16 %v1372
        %v1441 = vunpack.c.l.b16 %v1373
        %v1442 = vunpack.c.l.b16 %v1374
        %v1443 = vunpack.c.l.b16 %v1375
        %v1444 = vunpack.c.l.b16 %v1376
        %v1445 = vunpack.c.l.b16 %v1377
        %v1446 = vunpack.c.l.b16 %v1378
        %v1447 = vunpack.c.l.b16 %v1379
        %v1448 = vunpack.c.l.b16 %v1380
        %v1449 = vpack.c.b16 %v1418, %v1417
        %v1450 = vpack.c.b16 %v1420, %v1419
        %v1451 = vpack.c.b16 %v1422, %v1421
        %v1452 = vpack.c.b16 %v1424, %v1423
        %v1453 = vpack.c.b16 %v1426, %v1425
        %v1454 = vpack.c.b16 %v1428, %v1427
        %v1455 = vpack.c.b16 %v1430, %v1429
        %v1456 = vpack.c.b16 %v1432, %v1431
        %v1457 = vpack.c.b16 %v1434, %v1433
        %v1458 = vpack.c.b16 %v1436, %v1435
        %v1459 = vpack.c.b16 %v1438, %v1437
        %v1460 = vpack.c.b16 %v1440, %v1439
        %v1461 = vpack.c.b16 %v1442, %v1441
        %v1462 = vpack.c.b16 %v1444, %v1443
        %v1463 = vpack.c.b16 %v1446, %v1445
        %v1464 = vpack.c.b16 %v1448, %v1447
        %1481 = vmatpush.bf16.msra.mxu0 %v1456
        %1482 = vmatpush.bf16.msra.mxu0 %v1455
        %1483 = vmatpush.bf16.msra.mxu0 %v1454
        %1484 = vmatpush.bf16.msra.mxu0 %v1453
        %1485 = vmatpush.bf16.msra.mxu0 %v1452
        %1486 = vmatpush.bf16.msra.mxu0 %v1451
        %1487 = vmatpush.bf16.msra.mxu0 %v1450
        %1488 = vmatpush.bf16.msra.mxu0 %v1449
        %1489 = vmatmul.bf16.gmra.mxu0 %v1345
        %v1490 = vpop.f32.mrf.mxu0
        %v1491 = vadd.f32 %v1383, %v1490
        %v1492 = vpop.f32.mrf.mxu0
        %v1493 = vadd.f32 %v1383, %v1492
        %1494 = vmatmul.bf16.gmra.mxu0 %v1347
        %v1495 = vpop.f32.mrf.mxu0
        %v1496 = vadd.f32 %v1383, %v1495
        %v1497 = vpop.f32.mrf.mxu0
        %v1498 = vadd.f32 %v1383, %v1497
        %1499 = vdwg.mxu0
        %1500 = vmatpush.bf16.msra.mxu0 %v1464
        %1501 = vmatpush.bf16.msra.mxu0 %v1463
        %1502 = vmatpush.bf16.msra.mxu0 %v1462
        %1503 = vmatpush.bf16.msra.mxu0 %v1461
        %1504 = vmatpush.bf16.msra.mxu0 %v1460
        %1505 = vmatpush.bf16.msra.mxu0 %v1459
        %1506 = vmatpush.bf16.msra.mxu0 %v1458
        %1507 = vmatpush.bf16.msra.mxu0 %v1457
        %1508 = vmatmul.bf16.gmra.mxu0 %v1346
        %v1509 = vpop.f32.mrf.mxu0
        %v1510 = vadd.f32 %v1491, %v1509
        %v1511 = vpop.f32.mrf.mxu0
        %v1512 = vadd.f32 %v1493, %v1511
        %1513 = vmatmul.bf16.gmra.mxu0 %v1348
        %v1514 = vpop.f32.mrf.mxu0
        %v1515 = vadd.f32 %v1496, %v1514
        %v1516 = vpop.f32.mrf.mxu0
        %v1517 = vadd.f32 %v1498, %v1516
        %1518 = vdwg.mxu0
        %v1519 = vld [vmem:[%s418] sm:$0xff]
        %v1520 = vld [vmem:[%s418 + $0x8] sm:$0xff]
        %v1521 = vld [vmem:[%s418 + $0x10] sm:$0xff]
        %v1522 = vld [vmem:[%s418 + $0x18] sm:$0xff]
        %v1523 = vmul.f32 %v1510, 0.5
        %v1524 = vmul.f32 %v1512, 0.5
        %v1525 = vmul.f32 %v1515, 0.5
        %v1526 = vmul.f32 %v1517, 0.5
        %v1527 = vmul.f32 %v1523, 1.442695
        %v1528 = vpow.pop %v1527
        %v1529 = vmul.f32 %v1524, 1.442695
        %v1530 = vpow.pop %v1529
        %v1531 = vmul.f32 %v1525, 1.442695
        %v1532 = vpow.pop %v1531
        %v1533 = vmul.f32 %v1526, 1.442695
        %v1534 = vpow.pop %v1533
        %1539 = vrot.lane.b32.xlu0 %v1528, 96
        %v1540 = vpop.permute.xlu0 %1539
        %1541 = vrot.lane.b32.xlu0 %v1530, 96
        %v1542 = vpop.permute.xlu0 %1541
        %1543 = vrot.lane.b32.xlu0 %v1532, 96
        %v1544 = vpop.permute.xlu0 %1543
        %1545 = vrot.lane.b32.xlu0 %v1534, 96
        %v1546 = vpop.permute.xlu0 %1545
        %v1551 = vmul.f32 %v1519, %v1540
        %v1552 = vmul.f32 %v1520, %v1542
        %v1553 = vmul.f32 %v1521, %v1544
        %v1554 = vmul.f32 %v1522, %v1546
        %v1555 = vadd.f32 %v1551, %v1510
        %v1556 = vadd.f32 %v1552, %v1512
        %v1557 = vadd.f32 %v1553, %v1515
        %v1558 = vadd.f32 %v1554, %v1517
        %v1559 = vpack.c.bf16 %v1556, %v1555
        %v1560 = vpack.c.bf16 %v1558, %v1557
        %v1561 = vld [vmem:[%s6] sm:$0xff]
        %v1562 = vld [vmem:[%s6 + $0x8] sm:$0xff]
        %v1563 = vld [vmem:[%s6 + $0x10] sm:$0xff]
        %v1564 = vld [vmem:[%s6 + $0x18] sm:$0xff]
        %v1565 = vld [vmem:[%s7] sm:$0x3]
        %v1567 = vperm.slane %v1565, 0
        %v1568 = vperm.slane %v1565, 1
        %v1575 = vunpack.c.l.b16 %v1561
        %v1576 = vunpack.c.h.b16 %v1561
        %v1577 = vunpack.c.l.b16 %v1562
        %v1578 = vunpack.c.h.b16 %v1562
        %v1579 = vunpack.c.l.b16 %v1563
        %v1580 = vunpack.c.h.b16 %v1563
        %v1581 = vunpack.c.l.b16 %v1564
        %v1582 = vunpack.c.h.b16 %v1564
        %v1583 = vpack.c.b16 %v1577, %v1575
        %v1584 = vpack.c.b16 %v1578, %v1576
        %v1585 = vpack.c.b16 %v1581, %v1579
        %v1586 = vpack.c.b16 %v1582, %v1580
        %vm1591 = vcmask 261120
        %v1593 = vsel %vm1591, %v1559, 0
        %v1596 = vsel %vm1591, %v1560, 0
        %1598 = vmatpush.bf16.msra.mxu0 0
        %1599 = vmatpush.bf16.msra.mxu0 0
        %1600 = vmatpush.bf16.msra.mxu0 0
        %1601 = vmatpush.bf16.msra.mxu0 0
        %1602 = vmatpush.bf16.msra.mxu0 0
        %1603 = vmatpush.bf16.msra.mxu0 0
        %1604 = vmatpush.bf16.msra.mxu0 %v1585
        %1605 = vmatpush.bf16.msra.mxu0 %v1583
        %1606 = vmatmul.bf16.gmra.mxu0 %v1593
        %v1607 = vpop.f32.mrf.mxu0
        %v1608 = vadd.f32 %v1567, %v1607
        %v1609 = vpop.f32.mrf.mxu0
        %v1610 = vadd.f32 %v1567, %v1609
        %1611 = vmatmul.bf16.gmra.mxu0 %v1596
        %v1612 = vpop.f32.mrf.mxu0
        %v1613 = vadd.f32 %v1567, %v1612
        %v1614 = vpop.f32.mrf.mxu0
        %v1615 = vadd.f32 %v1567, %v1614
        %1616 = vdwg.mxu0
        %1617 = vmatpush.bf16.msra.mxu0 0
        %1618 = vmatpush.bf16.msra.mxu0 0
        %1619 = vmatpush.bf16.msra.mxu0 0
        %1620 = vmatpush.bf16.msra.mxu0 0
        %1621 = vmatpush.bf16.msra.mxu0 0
        %1622 = vmatpush.bf16.msra.mxu0 0
        %1623 = vmatpush.bf16.msra.mxu0 %v1586
        %1624 = vmatpush.bf16.msra.mxu0 %v1584
        %1625 = vmatmul.bf16.gmra.mxu0 %v1593
        %v1626 = vpop.f32.mrf.mxu0
        %v1627 = vadd.f32 %v1568, %v1626
        %v1628 = vpop.f32.mrf.mxu0
        %v1629 = vadd.f32 %v1568, %v1628
        %1630 = vmatmul.bf16.gmra.mxu0 %v1596
        %v1631 = vpop.f32.mrf.mxu0
        %v1632 = vadd.f32 %v1568, %v1631
        %v1633 = vpop.f32.mrf.mxu0
        %v1634 = vadd.f32 %v1568, %v1633
        %1635 = vdwg.mxu0
        %v1636 = vmax.f32 %v1608, 0.0
        %v1637 = vmax.f32 %v1627, 0.0
        %v1638 = vmax.f32 %v1610, 0.0
        %v1639 = vmax.f32 %v1629, 0.0
        %v1640 = vmax.f32 %v1613, 0.0
        %v1641 = vmax.f32 %v1632, 0.0
        %v1642 = vmax.f32 %v1615, 0.0
        %v1643 = vmax.f32 %v1634, 0.0
        %v1644 = vpack.c.bf16 %v1638, %v1636
        %v1645 = vpack.c.bf16 %v1639, %v1637
        %v1646 = vpack.c.bf16 %v1642, %v1640
        %v1647 = vpack.c.bf16 %v1643, %v1641
        %v1648 = vld [vmem:[%s8] sm:$0xff]
        %v1649 = vld [vmem:[%s8 + $0x8] sm:$0xff]
        %v1650 = vld [vmem:[%s8 + $0x10] sm:$0xff]
        %v1651 = vld [vmem:[%s8 + $0x18] sm:$0xf]
        %v1652 = vld [vmem:[%s8 + $0x1c] sm:$0xff]
        %v1653 = vld [vmem:[%s8 + $0x24] sm:$0xff]
        %v1654 = vld [vmem:[%s8 + $0x2c] sm:$0xff]
        %v1655 = vld [vmem:[%s8 + $0x34] sm:$0xf]
        %v1656 = vld [vmem:[%s8 + $0x38] sm:$0xff]
        %v1657 = vld [vmem:[%s8 + $0x40] sm:$0xff]
        %v1658 = vld [vmem:[%s8 + $0x48] sm:$0xff]
        %v1659 = vld [vmem:[%s8 + $0x50] sm:$0xf]
        %v1660 = vld [vmem:[%s8 + $0x54] sm:$0xff]
        %v1661 = vld [vmem:[%s8 + $0x5c] sm:$0xff]
        %v1662 = vld [vmem:[%s8 + $0x64] sm:$0xff]
        %v1663 = vld [vmem:[%s8 + $0x6c] sm:$0xf]
        %v1664 = vld [vmem:[%s8 + $0x70] sm:$0xff]
        %v1665 = vld [vmem:[%s8 + $0x78] sm:$0xff]
        %v1666 = vld [vmem:[%s8 + $0x80] sm:$0xff]
        %v1667 = vld [vmem:[%s8 + $0x88] sm:$0xf]
        %v1668 = vld [vmem:[%s8 + $0x8c] sm:$0xff]
        %v1669 = vld [vmem:[%s8 + $0x94] sm:$0xff]
        %v1670 = vld [vmem:[%s8 + $0x9c] sm:$0xff]
        %v1671 = vld [vmem:[%s8 + $0xa4] sm:$0xf]
        %v1672 = vld [vmem:[%s8 + $0xa8] sm:$0xff]
        %v1673 = vld [vmem:[%s8 + $0xb0] sm:$0xff]
        %v1674 = vld [vmem:[%s8 + $0xb8] sm:$0xff]
        %v1675 = vld [vmem:[%s8 + $0xc0] sm:$0xf]
        %v1676 = vld [vmem:[%s8 + $0xc4] sm:$0xff]
        %v1677 = vld [vmem:[%s8 + $0xcc] sm:$0xff]
        %v1678 = vld [vmem:[%s8 + $0xd4] sm:$0xff]
        %v1679 = vld [vmem:[%s8 + $0xdc] sm:$0xf]
        %v1680 = vld [vmem:[%s8 + $0xe0] sm:$0xff]
        %v1681 = vld [vmem:[%s8 + $0xe8] sm:$0xff]
        %v1682 = vld [vmem:[%s8 + $0xf0] sm:$0xff]
        %v1683 = vld [vmem:[%s8 + $0xf8] sm:$0xf]
        %v1684 = vld [vmem:[%s8 + $0xfc] sm:$0xff]
        %v1685 = vld [vmem:[%s8 + $0x104] sm:$0xff]
        %v1686 = vld [vmem:[%s8 + $0x10c] sm:$0xff]
        %v1687 = vld [vmem:[%s8 + $0x114] sm:$0xf]
        %v1688 = vld [vmem:[%s8 + $0x118] sm:$0xff]
        %v1689 = vld [vmem:[%s8 + $0x120] sm:$0xff]
        %v1690 = vld [vmem:[%s8 + $0x128] sm:$0xff]
        %v1691 = vld [vmem:[%s8 + $0x130] sm:$0xf]
        %v1692 = vld [vmem:[%s8 + $0x134] sm:$0xff]
        %v1693 = vld [vmem:[%s8 + $0x13c] sm:$0xff]
        %v1694 = vld [vmem:[%s8 + $0x144] sm:$0xff]
        %v1695 = vld [vmem:[%s8 + $0x14c] sm:$0xf]
        %v1696 = vld [vmem:[%s8 + $0x150] sm:$0xff]
        %v1697 = vld [vmem:[%s8 + $0x158] sm:$0xff]
        %v1698 = vld [vmem:[%s8 + $0x160] sm:$0xff]
        %v1699 = vld [vmem:[%s8 + $0x168] sm:$0xf]
        %v1700 = vld [vmem:[%s8 + $0x16c] sm:$0xff]
        %v1701 = vld [vmem:[%s8 + $0x174] sm:$0xff]
        %v1702 = vld [vmem:[%s8 + $0x17c] sm:$0xff]
        %v1703 = vld [vmem:[%s8 + $0x184] sm:$0xf]
        %v1704 = vld [vmem:[%s8 + $0x188] sm:$0xff]
        %v1705 = vld [vmem:[%s8 + $0x190] sm:$0xff]
        %v1706 = vld [vmem:[%s8 + $0x198] sm:$0xff]
        %v1707 = vld [vmem:[%s8 + $0x1a0] sm:$0xf]
        %v1708 = vld [vmem:[%s8 + $0x1a4] sm:$0xff]
        %v1709 = vld [vmem:[%s8 + $0x1ac] sm:$0xff]
        %v1710 = vld [vmem:[%s8 + $0x1b4] sm:$0xff]
        %v1711 = vld [vmem:[%s8 + $0x1bc] sm:$0xf]
        %v1712 = vld [vmem:[%s8 + $0x1c0] sm:$0xff]
        %v1713 = vld [vmem:[%s8 + $0x1c8] sm:$0xff]
        %v1714 = vld [vmem:[%s8 + $0x1d0] sm:$0xff]
        %v1715 = vld [vmem:[%s8 + $0x1d8] sm:$0xf]
        %v1716 = vld [vmem:[%s8 + $0x1dc] sm:$0xff]
        %v1717 = vld [vmem:[%s8 + $0x1e4] sm:$0xff]
        %v1718 = vld [vmem:[%s8 + $0x1ec] sm:$0xff]
        %v1719 = vld [vmem:[%s8 + $0x1f4] sm:$0xf]
        %v1720 = vld [vmem:[%s8 + $0x1f8] sm:$0xff]
        %v1721 = vld [vmem:[%s8 + $0x200] sm:$0xff]
        %v1722 = vld [vmem:[%s8 + $0x208] sm:$0xff]
        %v1723 = vld [vmem:[%s8 + $0x210] sm:$0xf]
        %v1724 = vld [vmem:[%s8 + $0x214] sm:$0xff]
        %v1725 = vld [vmem:[%s8 + $0x21c] sm:$0xff]
        %v1726 = vld [vmem:[%s8 + $0x224] sm:$0xff]
        %v1727 = vld [vmem:[%s8 + $0x22c] sm:$0xf]
        %v1728 = vld [vmem:[%s8 + $0x230] sm:$0xff]
        %v1729 = vld [vmem:[%s8 + $0x238] sm:$0xff]
        %v1730 = vld [vmem:[%s8 + $0x240] sm:$0xff]
        %v1731 = vld [vmem:[%s8 + $0x248] sm:$0xf]
        %v1732 = vld [vmem:[%s8 + $0x24c] sm:$0xff]
        %v1733 = vld [vmem:[%s8 + $0x254] sm:$0xff]
        %v1734 = vld [vmem:[%s8 + $0x25c] sm:$0xff]
        %v1735 = vld [vmem:[%s8 + $0x264] sm:$0xf]
        %v1736 = vld [vmem:[%s8 + $0x268] sm:$0xff]
        %v1737 = vld [vmem:[%s8 + $0x270] sm:$0xff]
        %v1738 = vld [vmem:[%s8 + $0x278] sm:$0xff]
        %v1739 = vld [vmem:[%s8 + $0x280] sm:$0xf]
        %v1740 = vld [vmem:[%s8 + $0x284] sm:$0xff]
        %v1741 = vld [vmem:[%s8 + $0x28c] sm:$0xff]
        %v1742 = vld [vmem:[%s8 + $0x294] sm:$0xff]
        %v1743 = vld [vmem:[%s8 + $0x29c] sm:$0xf]
        %v1744 = vld [vmem:[%s8 + $0x2a0] sm:$0xff]
        %v1745 = vld [vmem:[%s8 + $0x2a8] sm:$0xff]
        %v1746 = vld [vmem:[%s8 + $0x2b0] sm:$0xff]
        %v1747 = vld [vmem:[%s8 + $0x2b8] sm:$0xf]
        %v1748 = vld [vmem:[%s8 + $0x2bc] sm:$0xff]
        %v1749 = vld [vmem:[%s8 + $0x2c4] sm:$0xff]
        %v1750 = vld [vmem:[%s8 + $0x2cc] sm:$0xff]
        %v1751 = vld [vmem:[%s8 + $0x2d4] sm:$0xf]
        %v1752 = vld [vmem:[%s8 + $0x2d8] sm:$0xff]
        %v1753 = vld [vmem:[%s8 + $0x2e0] sm:$0xff]
        %v1754 = vld [vmem:[%s8 + $0x2e8] sm:$0xff]
        %v1755 = vld [vmem:[%s8 + $0x2f0] sm:$0xf]
        %v1756 = vld [vmem:[%s8 + $0x2f4] sm:$0xff]
        %v1757 = vld [vmem:[%s8 + $0x2fc] sm:$0xff]
        %v1758 = vld [vmem:[%s8 + $0x304] sm:$0xff]
        %v1759 = vld [vmem:[%s8 + $0x30c] sm:$0xf]
        %v1760 = vld [vmem:[%s8 + $0x310] sm:$0xff]
        %v1761 = vld [vmem:[%s8 + $0x318] sm:$0xff]
        %v1762 = vld [vmem:[%s8 + $0x320] sm:$0xff]
        %v1763 = vld [vmem:[%s8 + $0x328] sm:$0xf]
        %v1764 = vld [vmem:[%s8 + $0x32c] sm:$0xff]
        %v1765 = vld [vmem:[%s8 + $0x334] sm:$0xff]
        %v1766 = vld [vmem:[%s8 + $0x33c] sm:$0xff]
        %v1767 = vld [vmem:[%s8 + $0x344] sm:$0xf]
        %v1768 = vld [vmem:[%s8 + $0x348] sm:$0xff]
        %v1769 = vld [vmem:[%s8 + $0x350] sm:$0xff]
        %v1770 = vld [vmem:[%s8 + $0x358] sm:$0xff]
        %v1771 = vld [vmem:[%s8 + $0x360] sm:$0xf]
        %v1772 = vld [vmem:[%s8 + $0x364] sm:$0xff]
        %v1773 = vld [vmem:[%s8 + $0x36c] sm:$0xff]
        %v1774 = vld [vmem:[%s8 + $0x374] sm:$0xff]
        %v1775 = vld [vmem:[%s8 + $0x37c] sm:$0xf]
        %v1776 = vld [vmem:[%s9] sm:$0x7f]
        %v1778 = vperm.slane %v1776, 0
        %v1779 = vperm.slane %v1776, 1
        %v1780 = vperm.slane %v1776, 2
        %v1781 = vperm.slane %v1776, 3
        %v1782 = vperm.slane %v1776, 4
        %v1783 = vperm.slane %v1776, 5
        %v1784 = vperm.slane %v1776, 6
        %v1920 = vunpack.c.l.b16 %v1648
        %v1921 = vunpack.c.h.b16 %v1648
        %v1922 = vunpack.c.l.b16 %v1649
        %v1923 = vunpack.c.h.b16 %v1649
        %v1924 = vunpack.c.l.b16 %v1650
        %v1925 = vunpack.c.h.b16 %v1650
        %v1926 = vunpack.c.l.b16 %v1651
        %v1927 = vunpack.c.l.b16 %v1652
        %v1928 = vunpack.c.h.b16 %v1652
        %v1929 = vunpack.c.l.b16 %v1653
        %v1930 = vunpack.c.h.b16 %v1653
        %v1931 = vunpack.c.l.b16 %v1654
        %v1932 = vunpack.c.h.b16 %v1654
        %v1933 = vunpack.c.l.b16 %v1655
        %v1934 = vunpack.c.l.b16 %v1656
        %v1935 = vunpack.c.h.b16 %v1656
        %v1936 = vunpack.c.l.b16 %v1657
        %v1937 = vunpack.c.h.b16 %v1657
        %v1938 = vunpack.c.l.b16 %v1658
        %v1939 = vunpack.c.h.b16 %v1658
        %v1940 = vunpack.c.l.b16 %v1659
        %v1941 = vunpack.c.l.b16 %v1660
        %v1942 = vunpack.c.h.b16 %v1660
        %v1943 = vunpack.c.l.b16 %v1661
        %v1944 = vunpack.c.h.b16 %v1661
        %v1945 = vunpack.c.l.b16 %v1662
        %v1946 = vunpack.c.h.b16 %v1662
        %v1947 = vunpack.c.l.b16 %v1663
        %v1948 = vunpack.c.l.b16 %v1664
        %v1949 = vunpack.c.h.b16 %v1664
        %v1950 = vunpack.c.l.b16 %v1665
        %v1951 = vunpack.c.h.b16 %v1665
        %v1952 = vunpack.c.l.b16 %v1666
        %v1953 = vunpack.c.h.b16 %v1666
        %v1954 = vunpack.c.l.b16 %v1667
        %v1955 = vunpack.c.l.b16 %v1668
        %v1956 = vunpack.c.h.b16 %v1668
        %v1957 = vunpack.c.l.b16 %v1669
        %v1958 = vunpack.c.h.b16 %v1669
        %v1959 = vunpack.c.l.b16 %v1670
        %v1960 = vunpack.c.h.b16 %v1670
        %v1961 = vunpack.c.l.b16 %v1671
        %v1962 = vunpack.c.l.b16 %v1672
        %v1963 = vunpack.c.h.b16 %v1672
        %v1964 = vunpack.c.l.b16 %v1673
        %v1965 = vunpack.c.h.b16 %v1673
        %v1966 = vunpack.c.l.b16 %v1674
        %v1967 = vunpack.c.h.b16 %v1674
        %v1968 = vunpack.c.l.b16 %v1675
        %v1969 = vunpack.c.l.b16 %v1676
        %v1970 = vunpack.c.h.b16 %v1676
        %v1971 = vunpack.c.l.b16 %v1677
        %v1972 = vunpack.c.h.b16 %v1677
        %v1973 = vunpack.c.l.b16 %v1678
        %v1974 = vunpack.c.h.b16 %v1678
        %v1975 = vunpack.c.l.b16 %v1679
        %v1976 = vunpack.c.l.b16 %v1680
        %v1977 = vunpack.c.h.b16 %v1680
        %v1978 = vunpack.c.l.b16 %v1681
        %v1979 = vunpack.c.h.b16 %v1681
        %v1980 = vunpack.c.l.b16 %v1682
        %v1981 = vunpack.c.h.b16 %v1682
        %v1982 = vunpack.c.l.b16 %v1683
        %v1983 = vunpack.c.l.b16 %v1684
        %v1984 = vunpack.c.h.b16 %v1684
        %v1985 = vunpack.c.l.b16 %v1685
        %v1986 = vunpack.c.h.b16 %v1685
        %v1987 = vunpack.c.l.b16 %v1686
        %v1988 = vunpack.c.h.b16 %v1686
        %v1989 = vunpack.c.l.b16 %v1687
        %v1990 = vunpack.c.l.b16 %v1688
        %v1991 = vunpack.c.h.b16 %v1688
        %v1992 = vunpack.c.l.b16 %v1689
        %v1993 = vunpack.c.h.b16 %v1689
        %v1994 = vunpack.c.l.b16 %v1690
        %v1995 = vunpack.c.h.b16 %v1690
        %v1996 = vunpack.c.l.b16 %v1691
        %v1997 = vunpack.c.l.b16 %v1692
        %v1998 = vunpack.c.h.b16 %v1692
        %v1999 = vunpack.c.l.b16 %v1693
        %v2000 = vunpack.c.h.b16 %v1693
        %v2001 = vunpack.c.l.b16 %v1694
        %v2002 = vunpack.c.h.b16 %v1694
        %v2003 = vunpack.c.l.b16 %v1695
        %v2004 = vunpack.c.l.b16 %v1696
        %v2005 = vunpack.c.h.b16 %v1696
        %v2006 = vunpack.c.l.b16 %v1697
        %v2007 = vunpack.c.h.b16 %v1697
        %v2008 = vunpack.c.l.b16 %v1698
        %v2009 = vunpack.c.h.b16 %v1698
        %v2010 = vunpack.c.l.b16 %v1699
        %v2011 = vunpack.c.l.b16 %v1700
        %v2012 = vunpack.c.h.b16 %v1700
        %v2013 = vunpack.c.l.b16 %v1701
        %v2014 = vunpack.c.h.b16 %v1701
        %v2015 = vunpack.c.l.b16 %v1702
        %v2016 = vunpack.c.h.b16 %v1702
        %v2017 = vunpack.c.l.b16 %v1703
        %v2018 = vunpack.c.l.b16 %v1704
        %v2019 = vunpack.c.h.b16 %v1704
        %v2020 = vunpack.c.l.b16 %v1705
        %v2021 = vunpack.c.h.b16 %v1705
        %v2022 = vunpack.c.l.b16 %v1706
        %v2023 = vunpack.c.h.b16 %v1706
        %v2024 = vunpack.c.l.b16 %v1707
        %v2025 = vunpack.c.l.b16 %v1708
        %v2026 = vunpack.c.h.b16 %v1708
        %v2027 = vunpack.c.l.b16 %v1709
        %v2028 = vunpack.c.h.b16 %v1709
        %v2029 = vunpack.c.l.b16 %v1710
        %v2030 = vunpack.c.h.b16 %v1710
        %v2031 = vunpack.c.l.b16 %v1711
        %v2032 = vunpack.c.l.b16 %v1712
        %v2033 = vunpack.c.h.b16 %v1712
        %v2034 = vunpack.c.l.b16 %v1713
        %v2035 = vunpack.c.h.b16 %v1713
        %v2036 = vunpack.c.l.b16 %v1714
        %v2037 = vunpack.c.h.b16 %v1714
        %v2038 = vunpack.c.l.b16 %v1715
        %v2039 = vunpack.c.l.b16 %v1716
        %v2040 = vunpack.c.h.b16 %v1716
        %v2041 = vunpack.c.l.b16 %v1717
        %v2042 = vunpack.c.h.b16 %v1717
        %v2043 = vunpack.c.l.b16 %v1718
        %v2044 = vunpack.c.h.b16 %v1718
        %v2045 = vunpack.c.l.b16 %v1719
        %v2046 = vunpack.c.l.b16 %v1720
        %v2047 = vunpack.c.h.b16 %v1720
        %v2048 = vunpack.c.l.b16 %v1721
        %v2049 = vunpack.c.h.b16 %v1721
        %v2050 = vunpack.c.l.b16 %v1722
        %v2051 = vunpack.c.h.b16 %v1722
        %v2052 = vunpack.c.l.b16 %v1723
        %v2053 = vunpack.c.l.b16 %v1724
        %v2054 = vunpack.c.h.b16 %v1724
        %v2055 = vunpack.c.l.b16 %v1725
        %v2056 = vunpack.c.h.b16 %v1725
        %v2057 = vunpack.c.l.b16 %v1726
        %v2058 = vunpack.c.h.b16 %v1726
        %v2059 = vunpack.c.l.b16 %v1727
        %v2060 = vunpack.c.l.b16 %v1728
        %v2061 = vunpack.c.h.b16 %v1728
        %v2062 = vunpack.c.l.b16 %v1729
        %v2063 = vunpack.c.h.b16 %v1729
        %v2064 = vunpack.c.l.b16 %v1730
        %v2065 = vunpack.c.h.b16 %v1730
        %v2066 = vunpack.c.l.b16 %v1731
        %v2067 = vunpack.c.l.b16 %v1732
        %v2068 = vunpack.c.h.b16 %v1732
        %v2069 = vunpack.c.l.b16 %v1733
        %v2070 = vunpack.c.h.b16 %v1733
        %v2071 = vunpack.c.l.b16 %v1734
        %v2072 = vunpack.c.h.b16 %v1734
        %v2073 = vunpack.c.l.b16 %v1735
        %v2074 = vunpack.c.l.b16 %v1736
        %v2075 = vunpack.c.h.b16 %v1736
        %v2076 = vunpack.c.l.b16 %v1737
        %v2077 = vunpack.c.h.b16 %v1737
        %v2078 = vunpack.c.l.b16 %v1738
        %v2079 = vunpack.c.h.b16 %v1738
        %v2080 = vunpack.c.l.b16 %v1739
        %v2081 = vunpack.c.l.b16 %v1740
        %v2082 = vunpack.c.h.b16 %v1740
        %v2083 = vunpack.c.l.b16 %v1741
        %v2084 = vunpack.c.h.b16 %v1741
        %v2085 = vunpack.c.l.b16 %v1742
        %v2086 = vunpack.c.h.b16 %v1742
        %v2087 = vunpack.c.l.b16 %v1743
        %v2088 = vunpack.c.l.b16 %v1744
        %v2089 = vunpack.c.h.b16 %v1744
        %v2090 = vunpack.c.l.b16 %v1745
        %v2091 = vunpack.c.h.b16 %v1745
        %v2092 = vunpack.c.l.b16 %v1746
        %v2093 = vunpack.c.h.b16 %v1746
        %v2094 = vunpack.c.l.b16 %v1747
        %v2095 = vunpack.c.l.b16 %v1748
        %v2096 = vunpack.c.h.b16 %v1748
        %v2097 = vunpack.c.l.b16 %v1749
        %v2098 = vunpack.c.h.b16 %v1749
        %v2099 = vunpack.c.l.b16 %v1750
        %v2100 = vunpack.c.h.b16 %v1750
        %v2101 = vunpack.c.l.b16 %v1751
        %v2102 = vunpack.c.l.b16 %v1752
        %v2103 = vunpack.c.h.b16 %v1752
        %v2104 = vunpack.c.l.b16 %v1753
        %v2105 = vunpack.c.h.b16 %v1753
        %v2106 = vunpack.c.l.b16 %v1754
        %v2107 = vunpack.c.h.b16 %v1754
        %v2108 = vunpack.c.l.b16 %v1755
        %v2109 = vunpack.c.l.b16 %v1756
        %v2110 = vunpack.c.h.b16 %v1756
        %v2111 = vunpack.c.l.b16 %v1757
        %v2112 = vunpack.c.h.b16 %v1757
        %v2113 = vunpack.c.l.b16 %v1758
        %v2114 = vunpack.c.h.b16 %v1758
        %v2115 = vunpack.c.l.b16 %v1759
        %v2116 = vunpack.c.l.b16 %v1760
        %v2117 = vunpack.c.h.b16 %v1760
        %v2118 = vunpack.c.l.b16 %v1761
        %v2119 = vunpack.c.h.b16 %v1761
        %v2120 = vunpack.c.l.b16 %v1762
        %v2121 = vunpack.c.h.b16 %v1762
        %v2122 = vunpack.c.l.b16 %v1763
        %v2123 = vunpack.c.l.b16 %v1764
        %v2124 = vunpack.c.h.b16 %v1764
        %v2125 = vunpack.c.l.b16 %v1765
        %v2126 = vunpack.c.h.b16 %v1765
        %v2127 = vunpack.c.l.b16 %v1766
        %v2128 = vunpack.c.h.b16 %v1766
        %v2129 = vunpack.c.l.b16 %v1767
        %v2130 = vunpack.c.l.b16 %v1768
        %v2131 = vunpack.c.h.b16 %v1768
        %v2132 = vunpack.c.l.b16 %v1769
        %v2133 = vunpack.c.h.b16 %v1769
        %v2134 = vunpack.c.l.b16 %v1770
        %v2135 = vunpack.c.h.b16 %v1770
        %v2136 = vunpack.c.l.b16 %v1771
        %v2137 = vunpack.c.l.b16 %v1772
        %v2138 = vunpack.c.h.b16 %v1772
        %v2139 = vunpack.c.l.b16 %v1773
        %v2140 = vunpack.c.h.b16 %v1773
        %v2141 = vunpack.c.l.b16 %v1774
        %v2142 = vunpack.c.h.b16 %v1774
        %v2143 = vunpack.c.l.b16 %v1775
        %v2144 = vpack.c.b16 %v1927, %v1920
        %v2145 = vpack.c.b16 %v1928, %v1921
        %v2146 = vpack.c.b16 %v1929, %v1922
        %v2147 = vpack.c.b16 %v1930, %v1923
        %v2148 = vpack.c.b16 %v1931, %v1924
        %v2149 = vpack.c.b16 %v1932, %v1925
        %v2150 = vpack.c.b16 %v1933, %v1926
        %v2151 = vpack.c.b16 %v1941, %v1934
        %v2152 = vpack.c.b16 %v1942, %v1935
        %v2153 = vpack.c.b16 %v1943, %v1936
        %v2154 = vpack.c.b16 %v1944, %v1937
        %v2155 = vpack.c.b16 %v1945, %v1938
        %v2156 = vpack.c.b16 %v1946, %v1939
        %v2157 = vpack.c.b16 %v1947, %v1940
        %v2158 = vpack.c.b16 %v1955, %v1948
        %v2159 = vpack.c.b16 %v1956, %v1949
        %v2160 = vpack.c.b16 %v1957, %v1950
        %v2161 = vpack.c.b16 %v1958, %v1951
        %v2162 = vpack.c.b16 %v1959, %v1952
        %v2163 = vpack.c.b16 %v1960, %v1953
        %v2164 = vpack.c.b16 %v1961, %v1954
        %v2165 = vpack.c.b16 %v1969, %v1962
        %v2166 = vpack.c.b16 %v1970, %v1963
        %v2167 = vpack.c.b16 %v1971, %v1964
        %v2168 = vpack.c.b16 %v1972, %v1965
        %v2169 = vpack.c.b16 %v1973, %v1966
        %v2170 = vpack.c.b16 %v1974, %v1967
        %v2171 = vpack.c.b16 %v1975, %v1968
        %v2172 = vpack.c.b16 %v1983, %v1976
        %v2173 = vpack.c.b16 %v1984, %v1977
        %v2174 = vpack.c.b16 %v1985, %v1978
        %v2175 = vpack.c.b16 %v1986, %v1979
        %v2176 = vpack.c.b16 %v1987, %v1980
        %v2177 = vpack.c.b16 %v1988, %v1981
        %v2178 = vpack.c.b16 %v1989, %v1982
        %v2179 = vpack.c.b16 %v1997, %v1990
        %v2180 = vpack.c.b16 %v1998, %v1991
        %v2181 = vpack.c.b16 %v1999, %v1992
        %v2182 = vpack.c.b16 %v2000, %v1993
        %v2183 = vpack.c.b16 %v2001, %v1994
        %v2184 = vpack.c.b16 %v2002, %v1995
        %v2185 = vpack.c.b16 %v2003, %v1996
        %v2186 = vpack.c.b16 %v2011, %v2004
        %v2187 = vpack.c.b16 %v2012, %v2005
        %v2188 = vpack.c.b16 %v2013, %v2006
        %v2189 = vpack.c.b16 %v2014, %v2007
        %v2190 = vpack.c.b16 %v2015, %v2008
        %v2191 = vpack.c.b16 %v2016, %v2009
        %v2192 = vpack.c.b16 %v2017, %v2010
        %v2193 = vpack.c.b16 %v2025, %v2018
        %v2194 = vpack.c.b16 %v2026, %v2019
        %v2195 = vpack.c.b16 %v2027, %v2020
        %v2196 = vpack.c.b16 %v2028, %v2021
        %v2197 = vpack.c.b16 %v2029, %v2022
        %v2198 = vpack.c.b16 %v2030, %v2023
        %v2199 = vpack.c.b16 %v2031, %v2024
        %v2200 = vpack.c.b16 %v2039, %v2032
        %v2201 = vpack.c.b16 %v2040, %v2033
        %v2202 = vpack.c.b16 %v2041, %v2034
        %v2203 = vpack.c.b16 %v2042, %v2035
        %v2204 = vpack.c.b16 %v2043, %v2036
        %v2205 = vpack.c.b16 %v2044, %v2037
        %v2206 = vpack.c.b16 %v2045, %v2038
        %v2207 = vpack.c.b16 %v2053, %v2046
        %v2208 = vpack.c.b16 %v2054, %v2047
        %v2209 = vpack.c.b16 %v2055, %v2048
        %v2210 = vpack.c.b16 %v2056, %v2049
        %v2211 = vpack.c.b16 %v2057, %v2050
        %v2212 = vpack.c.b16 %v2058, %v2051
        %v2213 = vpack.c.b16 %v2059, %v2052
        %v2214 = vpack.c.b16 %v2067, %v2060
        %v2215 = vpack.c.b16 %v2068, %v2061
        %v2216 = vpack.c.b16 %v2069, %v2062
        %v2217 = vpack.c.b16 %v2070, %v2063
        %v2218 = vpack.c.b16 %v2071, %v2064
        %v2219 = vpack.c.b16 %v2072, %v2065
        %v2220 = vpack.c.b16 %v2073, %v2066
        %v2221 = vpack.c.b16 %v2081, %v2074
        %v2222 = vpack.c.b16 %v2082, %v2075
        %v2223 = vpack.c.b16 %v2083, %v2076
        %v2224 = vpack.c.b16 %v2084, %v2077
        %v2225 = vpack.c.b16 %v2085, %v2078
        %v2226 = vpack.c.b16 %v2086, %v2079
        %v2227 = vpack.c.b16 %v2087, %v2080
        %v2228 = vpack.c.b16 %v2095, %v2088
        %v2229 = vpack.c.b16 %v2096, %v2089
        %v2230 = vpack.c.b16 %v2097, %v2090
        %v2231 = vpack.c.b16 %v2098, %v2091
        %v2232 = vpack.c.b16 %v2099, %v2092
        %v2233 = vpack.c.b16 %v2100, %v2093
        %v2234 = vpack.c.b16 %v2101, %v2094
        %v2235 = vpack.c.b16 %v2109, %v2102
        %v2236 = vpack.c.b16 %v2110, %v2103
        %v2237 = vpack.c.b16 %v2111, %v2104
        %v2238 = vpack.c.b16 %v2112, %v2105
        %v2239 = vpack.c.b16 %v2113, %v2106
        %v2240 = vpack.c.b16 %v2114, %v2107
        %v2241 = vpack.c.b16 %v2115, %v2108
        %v2242 = vpack.c.b16 %v2123, %v2116
        %v2243 = vpack.c.b16 %v2124, %v2117
        %v2244 = vpack.c.b16 %v2125, %v2118
        %v2245 = vpack.c.b16 %v2126, %v2119
        %v2246 = vpack.c.b16 %v2127, %v2120
        %v2247 = vpack.c.b16 %v2128, %v2121
        %v2248 = vpack.c.b16 %v2129, %v2122
        %v2249 = vpack.c.b16 %v2137, %v2130
        %v2250 = vpack.c.b16 %v2138, %v2131
        %v2251 = vpack.c.b16 %v2139, %v2132
        %v2252 = vpack.c.b16 %v2140, %v2133
        %v2253 = vpack.c.b16 %v2141, %v2134
        %v2254 = vpack.c.b16 %v2142, %v2135
        %v2255 = vpack.c.b16 %v2143, %v2136
        %2368 = vmatpush.bf16.msra.mxu0 %v2193
        %2369 = vmatpush.bf16.msra.mxu0 %v2186
        %2370 = vmatpush.bf16.msra.mxu0 %v2179
        %2371 = vmatpush.bf16.msra.mxu0 %v2172
        %2372 = vmatpush.bf16.msra.mxu0 %v2165
        %2373 = vmatpush.bf16.msra.mxu0 %v2158
        %2374 = vmatpush.bf16.msra.mxu0 %v2151
        %2375 = vmatpush.bf16.msra.mxu0 %v2144
        %2376 = vmatmul.bf16.gmra.mxu0 %v1644
        %v2377 = vpop.f32.mrf.mxu0
        %v2378 = vadd.f32 %v1778, %v2377
        %v2379 = vpop.f32.mrf.mxu0
        %v2380 = vadd.f32 %v1778, %v2379
        %2381 = vmatmul.bf16.gmra.mxu0 %v1646
        %v2382 = vpop.f32.mrf.mxu0
        %v2383 = vadd.f32 %v1778, %v2382
        %v2384 = vpop.f32.mrf.mxu0
        %v2385 = vadd.f32 %v1778, %v2384
        %2386 = vdwg.mxu0
        %2387 = vmatpush.bf16.msra.mxu0 %v2249
        %2388 = vmatpush.bf16.msra.mxu0 %v2242
        %2389 = vmatpush.bf16.msra.mxu0 %v2235
        %2390 = vmatpush.bf16.msra.mxu0 %v2228
        %2391 = vmatpush.bf16.msra.mxu0 %v2221
        %2392 = vmatpush.bf16.msra.mxu0 %v2214
        %2393 = vmatpush.bf16.msra.mxu0 %v2207
        %2394 = vmatpush.bf16.msra.mxu0 %v2200
        %2395 = vmatmul.bf16.gmra.mxu0 %v1645
        %v2396 = vpop.f32.mrf.mxu0
        %v2397 = vadd.f32 %v2378, %v2396
        %v2398 = vpop.f32.mrf.mxu0
        %v2399 = vadd.f32 %v2380, %v2398
        %2400 = vmatmul.bf16.gmra.mxu0 %v1647
        %v2401 = vpop.f32.mrf.mxu0
        %v2402 = vadd.f32 %v2383, %v2401
        %v2403 = vpop.f32.mrf.mxu0
        %v2404 = vadd.f32 %v2385, %v2403
        %2405 = vdwg.mxu0
        %2406 = vmatpush.bf16.msra.mxu0 %v2194
        %2407 = vmatpush.bf16.msra.mxu0 %v2187
        %2408 = vmatpush.bf16.msra.mxu0 %v2180
        %2409 = vmatpush.bf16.msra.mxu0 %v2173
        %2410 = vmatpush.bf16.msra.mxu0 %v2166
        %2411 = vmatpush.bf16.msra.mxu0 %v2159
        %2412 = vmatpush.bf16.msra.mxu0 %v2152
        %2413 = vmatpush.bf16.msra.mxu0 %v2145
        %2414 = vmatmul.bf16.gmra.mxu0 %v1644
        %v2415 = vpop.f32.mrf.mxu0
        %v2416 = vadd.f32 %v1779, %v2415
        %v2417 = vpop.f32.mrf.mxu0
        %v2418 = vadd.f32 %v1779, %v2417
        %2419 = vmatmul.bf16.gmra.mxu0 %v1646
        %v2420 = vpop.f32.mrf.mxu0
        %v2421 = vadd.f32 %v1779, %v2420
        %v2422 = vpop.f32.mrf.mxu0
        %v2423 = vadd.f32 %v1779, %v2422
        %2424 = vdwg.mxu0
        %2425 = vmatpush.bf16.msra.mxu0 %v2250
        %2426 = vmatpush.bf16.msra.mxu0 %v2243
        %2427 = vmatpush.bf16.msra.mxu0 %v2236
        %2428 = vmatpush.bf16.msra.mxu0 %v2229
        %2429 = vmatpush.bf16.msra.mxu0 %v2222
        %2430 = vmatpush.bf16.msra.mxu0 %v2215
        %2431 = vmatpush.bf16.msra.mxu0 %v2208
        %2432 = vmatpush.bf16.msra.mxu0 %v2201
        %2433 = vmatmul.bf16.gmra.mxu0 %v1645
        %v2434 = vpop.f32.mrf.mxu0
        %v2435 = vadd.f32 %v2416, %v2434
        %v2436 = vpop.f32.mrf.mxu0
        %v2437 = vadd.f32 %v2418, %v2436
        %2438 = vmatmul.bf16.gmra.mxu0 %v1647
        %v2439 = vpop.f32.mrf.mxu0
        %v2440 = vadd.f32 %v2421, %v2439
        %v2441 = vpop.f32.mrf.mxu0
        %v2442 = vadd.f32 %v2423, %v2441
        %2443 = vdwg.mxu0
        %2444 = vmatpush.bf16.msra.mxu0 %v2195
        %2445 = vmatpush.bf16.msra.mxu0 %v2188
        %2446 = vmatpush.bf16.msra.mxu0 %v2181
        %2447 = vmatpush.bf16.msra.mxu0 %v2174
        %2448 = vmatpush.bf16.msra.mxu0 %v2167
        %2449 = vmatpush.bf16.msra.mxu0 %v2160
        %2450 = vmatpush.bf16.msra.mxu0 %v2153
        %2451 = vmatpush.bf16.msra.mxu0 %v2146
        %2452 = vmatmul.bf16.gmra.mxu0 %v1644
        %v2453 = vpop.f32.mrf.mxu0
        %v2454 = vadd.f32 %v1780, %v2453
        %v2455 = vpop.f32.mrf.mxu0
        %v2456 = vadd.f32 %v1780, %v2455
        %2457 = vmatmul.bf16.gmra.mxu0 %v1646
        %v2458 = vpop.f32.mrf.mxu0
        %v2459 = vadd.f32 %v1780, %v2458
        %v2460 = vpop.f32.mrf.mxu0
        %v2461 = vadd.f32 %v1780, %v2460
        %2462 = vdwg.mxu0
        %2463 = vmatpush.bf16.msra.mxu0 %v2251
        %2464 = vmatpush.bf16.msra.mxu0 %v2244
        %2465 = vmatpush.bf16.msra.mxu0 %v2237
        %2466 = vmatpush.bf16.msra.mxu0 %v2230
        %2467 = vmatpush.bf16.msra.mxu0 %v2223
        %2468 = vmatpush.bf16.msra.mxu0 %v2216
        %2469 = vmatpush.bf16.msra.mxu0 %v2209
        %2470 = vmatpush.bf16.msra.mxu0 %v2202
        %2471 = vmatmul.bf16.gmra.mxu0 %v1645
        %v2472 = vpop.f32.mrf.mxu0
        %v2473 = vadd.f32 %v2454, %v2472
        %v2474 = vpop.f32.mrf.mxu0
        %v2475 = vadd.f32 %v2456, %v2474
        %2476 = vmatmul.bf16.gmra.mxu0 %v1647
        %v2477 = vpop.f32.mrf.mxu0
        %v2478 = vadd.f32 %v2459, %v2477
        %v2479 = vpop.f32.mrf.mxu0
        %v2480 = vadd.f32 %v2461, %v2479
        %2481 = vdwg.mxu0
        %2482 = vmatpush.bf16.msra.mxu0 %v2196
        %2483 = vmatpush.bf16.msra.mxu0 %v2189
        %2484 = vmatpush.bf16.msra.mxu0 %v2182
        %2485 = vmatpush.bf16.msra.mxu0 %v2175
        %2486 = vmatpush.bf16.msra.mxu0 %v2168
        %2487 = vmatpush.bf16.msra.mxu0 %v2161
        %2488 = vmatpush.bf16.msra.mxu0 %v2154
        %2489 = vmatpush.bf16.msra.mxu0 %v2147
        %2490 = vmatmul.bf16.gmra.mxu0 %v1644
        %v2491 = vpop.f32.mrf.mxu0
        %v2492 = vadd.f32 %v1781, %v2491
        %v2493 = vpop.f32.mrf.mxu0
        %v2494 = vadd.f32 %v1781, %v2493
        %2495 = vmatmul.bf16.gmra.mxu0 %v1646
        %v2496 = vpop.f32.mrf.mxu0
        %v2497 = vadd.f32 %v1781, %v2496
        %v2498 = vpop.f32.mrf.mxu0
        %v2499 = vadd.f32 %v1781, %v2498
        %2500 = vdwg.mxu0
        %2501 = vmatpush.bf16.msra.mxu0 %v2252
        %2502 = vmatpush.bf16.msra.mxu0 %v2245
        %2503 = vmatpush.bf16.msra.mxu0 %v2238
        %2504 = vmatpush.bf16.msra.mxu0 %v2231
        %2505 = vmatpush.bf16.msra.mxu0 %v2224
        %2506 = vmatpush.bf16.msra.mxu0 %v2217
        %2507 = vmatpush.bf16.msra.mxu0 %v2210
        %2508 = vmatpush.bf16.msra.mxu0 %v2203
        %2509 = vmatmul.bf16.gmra.mxu0 %v1645
        %v2510 = vpop.f32.mrf.mxu0
        %v2511 = vadd.f32 %v2492, %v2510
        %v2512 = vpop.f32.mrf.mxu0
        %v2513 = vadd.f32 %v2494, %v2512
        %2514 = vmatmul.bf16.gmra.mxu0 %v1647
        %v2515 = vpop.f32.mrf.mxu0
        %v2516 = vadd.f32 %v2497, %v2515
        %v2517 = vpop.f32.mrf.mxu0
        %v2518 = vadd.f32 %v2499, %v2517
        %2519 = vdwg.mxu0
        %2520 = vmatpush.bf16.msra.mxu0 %v2197
        %2521 = vmatpush.bf16.msra.mxu0 %v2190
        %2522 = vmatpush.bf16.msra.mxu0 %v2183
        %2523 = vmatpush.bf16.msra.mxu0 %v2176
        %2524 = vmatpush.bf16.msra.mxu0 %v2169
        %2525 = vmatpush.bf16.msra.mxu0 %v2162
        %2526 = vmatpush.bf16.msra.mxu0 %v2155
        %2527 = vmatpush.bf16.msra.mxu0 %v2148
        %2528 = vmatmul.bf16.gmra.mxu0 %v1644
        %v2529 = vpop.f32.mrf.mxu0
        %v2530 = vadd.f32 %v1782, %v2529
        %v2531 = vpop.f32.mrf.mxu0
        %v2532 = vadd.f32 %v1782, %v2531
        %2533 = vmatmul.bf16.gmra.mxu0 %v1646
        %v2534 = vpop.f32.mrf.mxu0
        %v2535 = vadd.f32 %v1782, %v2534
        %v2536 = vpop.f32.mrf.mxu0
        %v2537 = vadd.f32 %v1782, %v2536
        %2538 = vdwg.mxu0
        %2539 = vmatpush.bf16.msra.mxu0 %v2253
        %2540 = vmatpush.bf16.msra.mxu0 %v2246
        %2541 = vmatpush.bf16.msra.mxu0 %v2239
        %2542 = vmatpush.bf16.msra.mxu0 %v2232
        %2543 = vmatpush.bf16.msra.mxu0 %v2225
        %2544 = vmatpush.bf16.msra.mxu0 %v2218
        %2545 = vmatpush.bf16.msra.mxu0 %v2211
        %2546 = vmatpush.bf16.msra.mxu0 %v2204
        %2547 = vmatmul.bf16.gmra.mxu0 %v1645
        %v2548 = vpop.f32.mrf.mxu0
        %v2549 = vadd.f32 %v2530, %v2548
        %v2550 = vpop.f32.mrf.mxu0
        %v2551 = vadd.f32 %v2532, %v2550
        %2552 = vmatmul.bf16.gmra.mxu0 %v1647
        %v2553 = vpop.f32.mrf.mxu0
        %v2554 = vadd.f32 %v2535, %v2553
        %v2555 = vpop.f32.mrf.mxu0
        %v2556 = vadd.f32 %v2537, %v2555
        %2557 = vdwg.mxu0
        %2558 = vmatpush.bf16.msra.mxu0 %v2198
        %2559 = vmatpush.bf16.msra.mxu0 %v2191
        %2560 = vmatpush.bf16.msra.mxu0 %v2184
        %2561 = vmatpush.bf16.msra.mxu0 %v2177
        %2562 = vmatpush.bf16.msra.mxu0 %v2170
        %2563 = vmatpush.bf16.msra.mxu0 %v2163
        %2564 = vmatpush.bf16.msra.mxu0 %v2156
        %2565 = vmatpush.bf16.msra.mxu0 %v2149
        %2566 = vmatmul.bf16.gmra.mxu0 %v1644
        %v2567 = vpop.f32.mrf.mxu0
        %v2568 = vadd.f32 %v1783, %v2567
        %v2569 = vpop.f32.mrf.mxu0
        %v2570 = vadd.f32 %v1783, %v2569
        %2571 = vmatmul.bf16.gmra.mxu0 %v1646
        %v2572 = vpop.f32.mrf.mxu0
        %v2573 = vadd.f32 %v1783, %v2572
        %v2574 = vpop.f32.mrf.mxu0
        %v2575 = vadd.f32 %v1783, %v2574
        %2576 = vdwg.mxu0
        %2577 = vmatpush.bf16.msra.mxu0 %v2254
        %2578 = vmatpush.bf16.msra.mxu0 %v2247
        %2579 = vmatpush.bf16.msra.mxu0 %v2240
        %2580 = vmatpush.bf16.msra.mxu0 %v2233
        %2581 = vmatpush.bf16.msra.mxu0 %v2226
        %2582 = vmatpush.bf16.msra.mxu0 %v2219
        %2583 = vmatpush.bf16.msra.mxu0 %v2212
        %2584 = vmatpush.bf16.msra.mxu0 %v2205
        %2585 = vmatmul.bf16.gmra.mxu0 %v1645
        %v2586 = vpop.f32.mrf.mxu0
        %v2587 = vadd.f32 %v2568, %v2586
        %v2588 = vpop.f32.mrf.mxu0
        %v2589 = vadd.f32 %v2570, %v2588
        %2590 = vmatmul.bf16.gmra.mxu0 %v1647
        %v2591 = vpop.f32.mrf.mxu0
        %v2592 = vadd.f32 %v2573, %v2591
        %v2593 = vpop.f32.mrf.mxu0
        %v2594 = vadd.f32 %v2575, %v2593
        %2595 = vdwg.mxu0
        %2596 = vmatpush.bf16.msra.mxu0 %v2199
        %2597 = vmatpush.bf16.msra.mxu0 %v2192
        %2598 = vmatpush.bf16.msra.mxu0 %v2185
        %2599 = vmatpush.bf16.msra.mxu0 %v2178
        %2600 = vmatpush.bf16.msra.mxu0 %v2171
        %2601 = vmatpush.bf16.msra.mxu0 %v2164
        %2602 = vmatpush.bf16.msra.mxu0 %v2157
        %2603 = vmatpush.bf16.msra.mxu0 %v2150
        %2604 = vmatmul.bf16.gmra.mxu0 %v1644
        %v2605 = vpop.f32.mrf.mxu0
        %v2606 = vadd.f32 %v1784, %v2605
        %v2607 = vpop.f32.mrf.mxu0
        %v2608 = vadd.f32 %v1784, %v2607
        %2609 = vmatmul.bf16.gmra.mxu0 %v1646
        %v2610 = vpop.f32.mrf.mxu0
        %v2611 = vadd.f32 %v1784, %v2610
        %v2612 = vpop.f32.mrf.mxu0
        %v2613 = vadd.f32 %v1784, %v2612
        %2614 = vdwg.mxu0
        %2615 = vmatpush.bf16.msra.mxu0 %v2255
        %2616 = vmatpush.bf16.msra.mxu0 %v2248
        %2617 = vmatpush.bf16.msra.mxu0 %v2241
        %2618 = vmatpush.bf16.msra.mxu0 %v2234
        %2619 = vmatpush.bf16.msra.mxu0 %v2227
        %2620 = vmatpush.bf16.msra.mxu0 %v2220
        %2621 = vmatpush.bf16.msra.mxu0 %v2213
        %2622 = vmatpush.bf16.msra.mxu0 %v2206
        %2623 = vmatmul.bf16.gmra.mxu0 %v1645
        %v2624 = vpop.f32.mrf.mxu0
        %v2625 = vadd.f32 %v2606, %v2624
        %v2626 = vpop.f32.mrf.mxu0
        %v2627 = vadd.f32 %v2608, %v2626
        %2628 = vmatmul.bf16.gmra.mxu0 %v1647
        %v2629 = vpop.f32.mrf.mxu0
        %v2630 = vadd.f32 %v2611, %v2629
        %v2631 = vpop.f32.mrf.mxu0
        %v2632 = vadd.f32 %v2613, %v2631
        %2633 = vdwg.mxu0
        %v2634 = vmul.f32 %v2397, 0.5
        %v2635 = vmul.f32 %v2435, 0.5
        %v2636 = vmul.f32 %v2473, 0.5
        %v2637 = vmul.f32 %v2511, 0.5
        %v2638 = vmul.f32 %v2549, 0.5
        %v2639 = vmul.f32 %v2587, 0.5
        %v2640 = vmul.f32 %v2625, 0.5
        %v2641 = vmul.f32 %v2399, 0.5
        %v2642 = vmul.f32 %v2437, 0.5
        %v2643 = vmul.f32 %v2475, 0.5
        %v2644 = vmul.f32 %v2513, 0.5
        %v2645 = vmul.f32 %v2551, 0.5
        %v2646 = vmul.f32 %v2589, 0.5
        %v2647 = vmul.f32 %v2627, 0.5
        %v2648 = vmul.f32 %v2402, 0.5
        %v2649 = vmul.f32 %v2440, 0.5
        %v2650 = vmul.f32 %v2478, 0.5
        %v2651 = vmul.f32 %v2516, 0.5
        %v2652 = vmul.f32 %v2554, 0.5
        %v2653 = vmul.f32 %v2592, 0.5
        %v2654 = vmul.f32 %v2630, 0.5
        %v2655 = vmul.f32 %v2404, 0.5
        %v2656 = vmul.f32 %v2442, 0.5
        %v2657 = vmul.f32 %v2480, 0.5
        %v2658 = vmul.f32 %v2518, 0.5
        %v2659 = vmul.f32 %v2556, 0.5
        %v2660 = vmul.f32 %v2594, 0.5
        %v2661 = vmul.f32 %v2632, 0.5
        %v2662 = vtanh.pop %v2634
        %v2663 = vtanh.pop %v2635
        %v2664 = vtanh.pop %v2636
        %v2665 = vtanh.pop %v2637
        %v2666 = vtanh.pop %v2638
        %v2667 = vtanh.pop %v2639
        %v2668 = vtanh.pop %v2640
        %v2669 = vtanh.pop %v2641
        %v2670 = vtanh.pop %v2642
        %v2671 = vtanh.pop %v2643
        %v2672 = vtanh.pop %v2644
        %v2673 = vtanh.pop %v2645
        %v2674 = vtanh.pop %v2646
        %v2675 = vtanh.pop %v2647
        %v2676 = vtanh.pop %v2648
        %v2677 = vtanh.pop %v2649
        %v2678 = vtanh.pop %v2650
        %v2679 = vtanh.pop %v2651
        %v2680 = vtanh.pop %v2652
        %v2681 = vtanh.pop %v2653
        %v2682 = vtanh.pop %v2654
        %v2683 = vtanh.pop %v2655
        %v2684 = vtanh.pop %v2656
        %v2685 = vtanh.pop %v2657
        %v2686 = vtanh.pop %v2658
        %v2687 = vtanh.pop %v2659
        %v2688 = vtanh.pop %v2660
        %v2689 = vtanh.pop %v2661
        %v2690 = vadd.f32 %v2662, 1.0
        %v2691 = vadd.f32 %v2663, 1.0
        %v2692 = vadd.f32 %v2664, 1.0
        %v2693 = vadd.f32 %v2665, 1.0
        %v2694 = vadd.f32 %v2666, 1.0
        %v2695 = vadd.f32 %v2667, 1.0
        %v2696 = vadd.f32 %v2668, 1.0
        %v2697 = vadd.f32 %v2669, 1.0
        %v2698 = vadd.f32 %v2670, 1.0
        %v2699 = vadd.f32 %v2671, 1.0
        %v2700 = vadd.f32 %v2672, 1.0
        %v2701 = vadd.f32 %v2673, 1.0
        %v2702 = vadd.f32 %v2674, 1.0
        %v2703 = vadd.f32 %v2675, 1.0
        %v2704 = vadd.f32 %v2676, 1.0
        %v2705 = vadd.f32 %v2677, 1.0
        %v2706 = vadd.f32 %v2678, 1.0
        %v2707 = vadd.f32 %v2679, 1.0
        %v2708 = vadd.f32 %v2680, 1.0
        %v2709 = vadd.f32 %v2681, 1.0
        %v2710 = vadd.f32 %v2682, 1.0
        %v2711 = vadd.f32 %v2683, 1.0
        %v2712 = vadd.f32 %v2684, 1.0
        %v2713 = vadd.f32 %v2685, 1.0
        %v2714 = vadd.f32 %v2686, 1.0
        %v2715 = vadd.f32 %v2687, 1.0
        %v2716 = vadd.f32 %v2688, 1.0
        %v2717 = vadd.f32 %v2689, 1.0
        %v2718 = vmul.f32 %v2690, 0.5
        %v2719 = vmul.f32 %v2691, 0.5
        %v2720 = vmul.f32 %v2692, 0.5
        %v2721 = vmul.f32 %v2693, 0.5
        %v2722 = vmul.f32 %v2694, 0.5
        %v2723 = vmul.f32 %v2695, 0.5
        %v2724 = vmul.f32 %v2696, 0.5
        %v2725 = vmul.f32 %v2697, 0.5
        %v2726 = vmul.f32 %v2698, 0.5
        %v2727 = vmul.f32 %v2699, 0.5
        %v2728 = vmul.f32 %v2700, 0.5
        %v2729 = vmul.f32 %v2701, 0.5
        %v2730 = vmul.f32 %v2702, 0.5
        %v2731 = vmul.f32 %v2703, 0.5
        %v2732 = vmul.f32 %v2704, 0.5
        %v2733 = vmul.f32 %v2705, 0.5
        %v2734 = vmul.f32 %v2706, 0.5
        %v2735 = vmul.f32 %v2707, 0.5
        %v2736 = vmul.f32 %v2708, 0.5
        %v2737 = vmul.f32 %v2709, 0.5
        %v2738 = vmul.f32 %v2710, 0.5
        %v2739 = vmul.f32 %v2711, 0.5
        %v2740 = vmul.f32 %v2712, 0.5
        %v2741 = vmul.f32 %v2713, 0.5
        %v2742 = vmul.f32 %v2714, 0.5
        %v2743 = vmul.f32 %v2715, 0.5
        %v2744 = vmul.f32 %v2716, 0.5
        %v2745 = vmul.f32 %v2717, 0.5
        %v2746 = vpack.c.bf16 %v2719, %v2718
        %v2747 = vpack.c.bf16 %v2721, %v2720
        %v2748 = vpack.c.bf16 %v2723, %v2722
        %v2749 = vpack.c.bf16 %v2724, %v2724
        %v2750 = vpack.c.bf16 %v2726, %v2725
        %v2751 = vpack.c.bf16 %v2728, %v2727
        %v2752 = vpack.c.bf16 %v2730, %v2729
        %v2753 = vpack.c.bf16 %v2731, %v2731
        %v2754 = vpack.c.bf16 %v2733, %v2732
        %v2755 = vpack.c.bf16 %v2735, %v2734
        %v2756 = vpack.c.bf16 %v2737, %v2736
        %v2757 = vpack.c.bf16 %v2738, %v2738
        %v2758 = vpack.c.bf16 %v2740, %v2739
        %v2759 = vpack.c.bf16 %v2742, %v2741
        %v2760 = vpack.c.bf16 %v2744, %v2743
        %v2761 = vpack.c.bf16 %v2745, %v2745
        %2762 = vst [vmem:[%s399] sm:$0xff] %v2746
        %2763 = vst [vmem:[%s399 + $0x8] sm:$0xff] %v2747
        %2764 = vst [vmem:[%s399 + $0x10] sm:$0xff] %v2748
        %vm2765 = vcmask 125952
        %2766 = vst.msk [vmem:[%s399 + $0x18] sm:$0xf] %vm2765, %v2749
        %2767 = vst [vmem:[%s399 + $0x1c] sm:$0xff] %v2750
        %2768 = vst [vmem:[%s399 + $0x24] sm:$0xff] %v2751
        %2769 = vst [vmem:[%s399 + $0x2c] sm:$0xff] %v2752
        %2770 = vst.msk [vmem:[%s399 + $0x34] sm:$0xf] %vm2765, %v2753
        %2771 = vst [vmem:[%s399 + $0x38] sm:$0xff] %v2754
        %2772 = vst [vmem:[%s399 + $0x40] sm:$0xff] %v2755
        %2773 = vst [vmem:[%s399 + $0x48] sm:$0xff] %v2756
        %2774 = vst.msk [vmem:[%s399 + $0x50] sm:$0xf] %vm2765, %v2757
        %2775 = vst [vmem:[%s399 + $0x54] sm:$0xff] %v2758
        %2776 = vst [vmem:[%s399 + $0x5c] sm:$0xff] %v2759
        %2777 = vst [vmem:[%s399 + $0x64] sm:$0xff] %v2760
        %2778 = vst.msk [vmem:[%s399 + $0x6c] sm:$0xf] %vm2765, %v2761
        %2783 = vrot.lane.b32.xlu0 %v1555, 64
        %v2784 = vpop.permute.xlu0 %2783
        %2785 = vrot.lane.b32.xlu0 %v1556, 64
        %v2786 = vpop.permute.xlu0 %2785
        %2787 = vrot.lane.b32.xlu0 %v1557, 64
        %v2788 = vpop.permute.xlu0 %2787
        %2789 = vrot.lane.b32.xlu0 %v1558, 64
        %v2790 = vpop.permute.xlu0 %2789
        %2795 = vrot.lane.b32.xlu0 %v1555, 96
        %v2796 = vpop.permute.xlu0 %2795
        %2797 = vrot.lane.b32.xlu0 %v1556, 96
        %v2798 = vpop.permute.xlu0 %2797
        %2799 = vrot.lane.b32.xlu0 %v1557, 96
        %v2800 = vpop.permute.xlu0 %2799
        %2801 = vrot.lane.b32.xlu0 %v1558, 96
        %v2802 = vpop.permute.xlu0 %2801
        %vm2807 = vcmask 523264
        %v2808 = vsel %vm2807, %v1510, %v2784
        %v2809 = vsel %vm2807, %v1512, %v2786
        %v2810 = vsel %vm2807, %v1515, %v2788
        %v2811 = vsel %vm2807, %v1517, %v2790
        %vm2812 = vcmask 785408
        %v2813 = vsel %vm2812, %v2808, %v2796
        %v2814 = vsel %vm2812, %v2809, %v2798
        %v2815 = vsel %vm2812, %v2810, %v2800
        %v2816 = vsel %vm2812, %v2811, %v2802
        %2817 = vst [vmem:[%s425] sm:$0xff] %v2813
        %2818 = vst [vmem:[%s425 + $0x8] sm:$0xff] %v2814
        %2819 = vst [vmem:[%s425 + $0x10] sm:$0xff] %v2815
        %2820 = vst [vmem:[%s425 + $0x18] sm:$0xff] %v2816
        %s2821 = sand.u32 %s254, 1
        %s2822 = scalar_lea.sflag [#allocation3], %s2821
        %s2823 = sand.u32 %s254, 1
        %s2824 = smul.addr %s2823, 112
        %s2825 = scalar_lea.vmem [#allocation2], %s2824
        %s2826 = smul.u32 4, %s26
        %p2827 = scmp.lt.s32.totalorder %s2826, 7
        %s2828 = scalar_select %p2827, %s2826, 7
        %s2829 = smul.addr %s2828, 8
        %s2830 = scalar_lea.vmem %s11, %s2829
        // Predicated region
        $region61: #{vae_forward.1} parent=59 // pred_check
          %p2831 = pneg %p264
        $region62: #{vae_forward.1} parent=59 // pred_check_branch
          %2833 = sbr.rel (%p2831) target = $region64
        $region63: #{vae_forward.1} parent=59 // pred_region
          %s2834 = smul.u32 4, %s26
          %2836 = vsyncadd %s2822, 0
          %s2837 = smul.addr %s2834, 7
          %s2838 = smul.addr %s2837, 4
          %s2839 = scalar_lea.hbm %s10, %s2838
          %s2840 = sshll.u32 %s2825, 4
          %s2841 = int_to_ptr.vmem [resolvable:$true] %s2840
          %s2842 = sshll.u32 %s2839, 4
          %s2843 = int_to_ptr.hbm [resolvable:$true] %s2842
          %2848 = dma.vmem_to_hbm [thread:$0]  %s2841, 1792, %s2843, %s2822, 448, 448, 28
        $region64: #{vae_forward.1} parent=59 // pred_fallthru
          _
        // Predicated region
        $region65: #{vae_forward.1} parent=59 // pred_check
          %p2849 = pneg %p290
        $region66: #{vae_forward.1} parent=59 // pred_check_branch
          %2851 = sbr.rel (%p2849) target = $region68
        $region67: #{vae_forward.1} parent=59 // pred_region
          %s2852 = smul.u32 4, %s26
        $region68: #{vae_forward.1} parent=59 // pred_fallthru
          _
      $region60: #{vae_forward.1} parent=5 // pred_fallthru
        _
      %p2853 = scmp.le.s32.totalorder 2, %s21
      // Predicated region
      $region69: #{vae_forward.1} parent=5 // pred_check
        %p2854 = pneg %p2853
      $region70: #{vae_forward.1} parent=5 // pred_check_branch
        %2856 = sbr.rel (%p2854) target = $region72
      $region71: #{vae_forward.1} parent=5 // pred_region
        %s2857 = ssub.s32 %s21, 2
        // Predicated region
        $region73: #{vae_forward.1} parent=71 // pred_check
          %p2858 = pneg %p270
        $region74: #{vae_forward.1} parent=71 // pred_check_branch
          %2860 = sbr.rel (%p2858) target = $region76
        $region75: #{vae_forward.1} parent=71 // pred_region
          %s2861 = sand.u32 %s255, 1
          %s2862 = scalar_lea.sflag [#allocation3], %s2861
          %s2863 = sand.u32 %s255, 1
          %s2864 = smul.addr %s2863, 112
          %s2865 = scalar_lea.vmem [#allocation2], %s2864
          %2867 = dma.done %s2862, 1792
        $region76: #{vae_forward.1} parent=71 // pred_fallthru
          _
        // Predicated region
        $region77: #{vae_forward.1} parent=71 // pred_check
          %p2868 = pneg %p296
        $region78: #{vae_forward.1} parent=71 // pred_check_branch
          %2870 = sbr.rel (%p2868) target = $region80
        $region79: #{vae_forward.1} parent=71 // pred_region
          %s2871 = smul.u32 4, %s27
          %p2872 = scmp.lt.s32.totalorder %s2871, 7
          %s2873 = scalar_select %p2872, %s2871, 7
          %s2874 = smul.addr %s2873, 8
          %s2875 = scalar_lea.vmem %s11, %s2874
        $region80: #{vae_forward.1} parent=71 // pred_fallthru
          _
      $region72: #{vae_forward.1} parent=5 // pred_fallthru
        _
    $region6: #{vae_forward.1} parent=1 // loop_footer
      %s25 = sadd.s32 1, %s21
    $region7: #{vae_forward.1} parent=1 // loop_footer_branch
      %20 = sbr.rel target = $region3
    $region8: #{vae_forward.1} parent=1 // loop_exit
      _
    %2876 = vsyncpa [#allocation3], 1
    %s2877 = scalar_lea.sflag [#allocation3], 1
    %2878 = vsyncpa %s2877, 1

</llo_original>
